<compile_context>
chip_gen: v7x
topology: tpu7x:2x2x1
jax: 0.10.0
libtpu: 0.0.40
codegen_flags: <defaults>
</compile_context>

<pallas_src>
import functools

import jax
import jax.numpy as jnp
from jax.experimental import pallas as pl
from jax.experimental.pallas import tpu as pltpu

CLS_POS = 0              # passage[:, 0,   :]            -> rep_cls
REL_POS = 160            # passage[:, 160, :]            -> rep_rel
EH_LO, EH_HI = 129, 160  # passage[:, 129:160, :].sum(1) -> e_h
ET_LO = 161              # passage[:, 161:,    :].sum(1) -> e_t
LANE = 128


def passage_attention_kernel(p_ref, z_ref, drop_ref, w1_ref, b1_ref, w2_ref,
                             b2_ref, out_ref, *, rel_row, eh_lo, eh_hi,
                             et_lo, et_hi, H, D):
    """One batch tile of the PassageAttention head (train branch).

    p_ref   : (TB, W, D)  window of `passage` (rows [b_start, b_start+W))
    z_ref   : (TB, H)     externally supplied standard-normal draw (randn_like)
    drop_ref: (TB, D)     pre-scaled dropout keep-mask (train mode)
    w1/b1   : stage-1 fused weights (3, D, 4H+D) / (1, 4H+D)
    w2/b2   : stage-2 fused weights (3H+D, D+CP) / (1, D+CP)
    out_ref : (TB, 2H+D+CP) packed  mu | logvar | rep_recon | scores
    """
    f32 = jnp.float32
    dot = functools.partial(jnp.dot, preferred_element_type=f32)

    p = p_ref[...]
    mm_dtype = p.dtype

    rep_rel = p[:, rel_row, :]                                  # sublane row load
    # 31-row entity sums as exact f32 adds (VPU/XLU, not MXU).
    e_h = jnp.sum(p[:, eh_lo:eh_hi, :].astype(f32), axis=1)
    e_t = jnp.sum(p[:, et_lo:et_hi, :].astype(f32), axis=1)

    # Stage 1 (summed partial matmuls; no lane concat of the LHS):
    #   out1 = [mu | logvar | e_hh | e_tt | final_rep]
    w1 = w1_ref[...]                                            # (3, D, 4H+D)
    out1 = (dot(rep_rel, w1[0])
            + dot(e_h.astype(mm_dtype), w1[1])
            + dot(e_t.astype(mm_dtype), w1[2])
            + b1_ref[...])
    mu = out1[:, 0:H]
    logvar = out1[:, H:2 * H]
    e_hh = out1[:, 2 * H:3 * H]
    e_tt = out1[:, 3 * H:4 * H]
    final_rep = out1[:, 4 * H:]

    # VAE reparameterization (z supplied, deterministic) + Dropout keep-mask.
    latent = mu + jnp.exp(0.5 * logvar) * z_ref[...]
    rel_emb = final_rep * drop_ref[...]

    # Stage 2: out2 = [rep_recon | logits (num_class padded to CP lanes)]
    w2 = w2_ref[...]                                            # (3H+D, D+CP)
    out2 = (dot(latent.astype(mm_dtype), w2[0:H])
            + dot(e_hh.astype(mm_dtype), w2[H:2 * H])
            + dot(e_tt.astype(mm_dtype), w2[2 * H:3 * H])
            + dot(rel_emb.astype(mm_dtype), w2[3 * H:])
            + b2_ref[...])

    # Lane-aligned (multiple-of-128) unmasked stores.
    out_ref[:, 0:2 * H] = out1[:, 0:2 * H]                      # mu | logvar
    out_ref[:, 2 * H:2 * H + D] = out2[:, 0:D]                  # rep_recon
    out_ref[:, 2 * H + D:] = jax.nn.sigmoid(out2[:, D:])        # rel scores


def _pick_batch_tile(B, tb_max):
    """Fixed, bounded batch tile: never TB == B for large B."""
    if B <= 8:
        return B
    tb = ((B + 1) // 2 + 7) // 8 * 8            # aim for >= 2 grid steps (megacore)
    return max(8, min(tb_max, tb))


def passage_attention_forward(passage, z, drop_mask, params, *,
                              tb_max=128, matmul_dtype=jnp.float32):
    """Returns (rel_scores, mu, logvar, rep_rel, rep_cls, rep_recon) — train branch.

    tb_max: 128 is safe everywhere; ~256 works on v6e/v7x with the row-sliced
            passage window.  matmul_dtype=jnp.bfloat16 halves the dominant HBM
            stream in production (demo keeps f32 to match the f32 reference).
    """
    B, L, D = passage.shape
    H = params["w_mu"].shape[1]
    C = params["w_fc"].shape[1]
    if L < ET_LO + 1:
        raise ValueError(f"forward() slice indices require L >= {ET_LO + 1}, got {L}")
    f32 = jnp.float32

    CP = pl.cdiv(C, LANE) * LANE        # classes padded to a full lane tile
    N1 = 4 * H + D                      # mu | logvar | e_hh | e_tt | final_rep
    N2 = D + CP                         # rep_recon | logits
    PACK = 2 * H + D + CP               # packed kernel output width

    # rep_cls / rep_rel are pure row copies -> slice them outside the kernel.
    rep_cls = passage[:, CLS_POS, :]
    rep_rel_out = passage[:, REL_POS, :]

    # Passage window: only rows [128, L) are consumed by the head.
    tail = L - 128
    if tail >= 8 and tail % 8 == 0 and 128 % tail == 0:
        b_start, wlen = 128, tail
    else:
        # TODO(synk): tails that do not tile the 128-row offset evenly fall back
        # to streaming the full sequence window (still correct, more HBM).
        b_start, wlen = 0, L
    bidx = b_start // wlen

    # Fixed batch tile + zero-padding to a multiple of it.
    TB = _pick_batch_tile(B, tb_max)
    steps = pl.cdiv(B, TB)
    Bp = steps * TB
    pad = Bp - B
    passage_mm = passage.astype(matmul_dtype)
    zp = z.astype(f32)
    dropp = drop_mask.astype(f32)
    if pad:
        passage_mm = jnp.pad(passage_mm, ((0, pad), (0, 0), (0, 0)))
        zp = jnp.pad(zp, ((0, pad), (0, 0)))
        dropp = jnp.pad(dropp, ((0, pad), (0, 0)))

    # Stage-1 fused weights: one (D, N1) slab per LHS source
    # (slab 0 <- rep_rel, slab 1 <- e_h, slab 2 <- e_t).
    W1 = jnp.zeros((3, D, N1), f32)
    W1 = W1.at[0, :, 0:H].set(params["w_mu"])
    W1 = W1.at[0, :, H:2 * H].set(params["w_logvar"])
    W1 = W1.at[1, :, 2 * H:3 * H].set(params["w_fc1"])
    W1 = W1.at[2, :, 3 * H:4 * H].set(params["w_fc2"])
    W1 = W1.at[0, :, 4 * H:].set(params["w_cls"][0:D])
    W1 = W1.at[1, :, 4 * H:].set(params["w_cls"][D:2 * D])
    W1 = W1.at[2, :, 4 * H:].set(params["w_cls"][2 * D:3 * D])
    b1 = jnp.concatenate([params["b_mu"], params["b_logvar"], params["b_fc1"],
                          params["b_fc2"], params["b_cls"]], axis=-1)

    # Stage-2 fused weights: row slabs keyed to [latent | e_hh | e_tt | rel_emb].
    W2 = jnp.zeros((3 * H + D, N2), f32)
    W2 = W2.at[0:3 * H, 0:D].set(params["w_recon"])
    W2 = W2.at[3 * H:, D:D + C].set(params["w_fc"])
    b2 = jnp.zeros((1, N2), f32)
    b2 = b2.at[:, 0:D].set(params["b_recon"])
    b2 = b2.at[:, D:D + C].set(params["b_fc"])

    W1 = W1.astype(matmul_dtype)
    W2 = W2.astype(matmul_dtype)
    b1 = b1.astype(f32)
    b2 = b2.astype(f32)

    kern = functools.partial(
        passage_attention_kernel,
        rel_row=REL_POS - b_start,
        eh_lo=EH_LO - b_start, eh_hi=EH_HI - b_start,
        et_lo=ET_LO - b_start, et_hi=L - b_start,
        H=H, D=D)

    def call(const_mode):
        def const(shape):
            nd = len(shape)
            if const_mode is None:
                return pl.BlockSpec(shape, lambda i, _nd=nd: (0,) * _nd)
            return pl.BlockSpec(shape, lambda i, _nd=nd: (0,) * _nd,
                                pipeline_mode=const_mode)
        return pl.pallas_call(
            kern,
            out_shape=jax.ShapeDtypeStruct((Bp, PACK), f32),
            grid=(steps,),
            in_specs=[
                pl.BlockSpec((TB, wlen, D), lambda i: (i, bidx, 0)),  # passage window
                pl.BlockSpec((TB, H), lambda i: (i, 0)),              # z
                pl.BlockSpec((TB, D), lambda i: (i, 0)),              # dropout keep-mask
                const(W1.shape), const(b1.shape),                     # stage-1 weights
                const(W2.shape), const(b2.shape),                     # stage-2 weights
            ],
            out_specs=pl.BlockSpec((TB, PACK), lambda i: (i, 0)),
            compiler_params=pltpu.CompilerParams(
                dimension_semantics=("parallel",)),   # v7x: 2 TCs split the batch axis
        )(passage_mm, zp, dropp, W1, b1, W2, b2)

    try:
        # Constant operands never change block index -> single-buffer them.
        packed = call(pl.Buffered(1))
    except Exception:
        # TODO(synk): pipeline_mode=pl.Buffered(1) not accepted by this jax build.
        packed = call(None)

    mu = packed[:B, 0:H]
    logvar = packed[:B, H:2 * H]
    rep_recon = packed[:B, 2 * H:2 * H + D]
    rel_scores = packed[:B, 2 * H + D:2 * H + D + C]
    return rel_scores, mu, logvar, rep_rel_out, rep_cls, rep_recon


def init_params(key, D, H, C):
    """Deterministic PyTorch-style (uniform +/- 1/sqrt(fan_in)) Linear init."""
    def linear(k, fan_in, fan_out):
        k1, k2 = jax.random.split(k)
        bound = 1.0 / (fan_in ** 0.5)
        w = jax.random.uniform(k1, (fan_in, fan_out), jnp.float32, -bound, bound)
        b = jax.random.uniform(k2, (1, fan_out), jnp.float32, -bound, bound)
        return w, b

    ks = jax.random.split(key, 7)
    p = {}
    p["w_fc1"], p["b_fc1"] = linear(ks[0], D, H)
    p["w_fc2"], p["b_fc2"] = linear(ks[1], D, H)
    p["w_mu"], p["b_mu"] = linear(ks[2], D, H)
    p["w_logvar"], p["b_logvar"] = linear(ks[3], D, H)
    p["w_recon"], p["b_recon"] = linear(ks[4], 3 * H, D)
    p["w_cls"], p["b_cls"] = linear(ks[5], 3 * D, D)
    p["w_fc"], p["b_fc"] = linear(ks[6], D, C)
    return p


def stub_passage_encoder(token, mask, emb_table, pos_table):
    # TODO(synk): the real passage_encoder is an external module handed to
    # __init__ (e.g. a BERT); stubbed as deterministic token + position
    # embeddings so the head kernel has a well-defined (B, L, D) input.
    p = emb_table[token] + pos_table[None, : token.shape[1], :]
    return p * mask[..., None].astype(p.dtype)


def _reference_forward(passage, z, drop_mask, params):
    """Pure-JAX transcription of the torch forward (train branch)."""
    rep_rel = passage[:, REL_POS, :]
    rep_cls = passage[:, CLS_POS, :]
    mu = rep_rel @ params["w_mu"] + params["b_mu"]
    logvar = rep_rel @ params["w_logvar"] + params["b_logvar"]
    latent = mu + jnp.exp(0.5 * logvar) * z
    e_h = jnp.sum(passage[:, EH_LO:EH_HI, :], axis=1)
    e_t = jnp.sum(passage[:, ET_LO:, :], axis=1)
    e_hh = e_h @ params["w_fc1"] + params["b_fc1"]
    e_tt = e_t @ params["w_fc2"] + params["b_fc2"]
    rep_recon = (jnp.concatenate([latent, e_hh, e_tt], -1) @ params["w_recon"]
                 + params["b_recon"])
    final_rep = (jnp.concatenate([rep_rel, e_h, e_t], -1) @ params["w_cls"]
                 + params["b_cls"])
    logits = (final_rep * drop_mask) @ params["w_fc"] + params["b_fc"]
    return (jax.nn.sigmoid(logits), mu, logvar, rep_rel, rep_cls, rep_recon)


if __name__ == "__main__":
    # Small shapes consistent with the module: the slice indices in forward()
    # require L >= 162; hidden_dim is fixed at 64 by the module.
    B, L, D, H, C, VOCAB = 2, 192, 128, 64, 8, 100

    key = jax.random.PRNGKey(0)
    k_tok, k_emb, k_pos, k_par, k_z, k_drop = jax.random.split(key, 6)

    token = jax.random.randint(k_tok, (B, L), 0, VOCAB)
    mask = jnp.ones((B, L), jnp.int32)
    emb_table = jax.random.normal(k_emb, (VOCAB, D), jnp.float32) * 0.02
    pos_table = jax.random.normal(k_pos, (L, D), jnp.float32) * 0.02
    passage = stub_passage_encoder(token, mask, emb_table, pos_table)

    params = init_params(k_par, D, H, C)
    z = jax.random.normal(k_z, (B, H), jnp.float32)              # torch.randn_like
    keep = jax.random.bernoulli(k_drop, 0.9, (B, D))
    drop_mask = keep.astype(jnp.float32) / 0.9                   # nn.Dropout(0.1), train

    outs = jax.block_until_ready(
        passage_attention_forward(passage, z, drop_mask, params))
    refs = _reference_forward(passage, z, drop_mask, params)

    names = ("rel_scores", "mu", "logvar", "rep_rel", "rep_cls", "rep_recon")
    for name, got, want in zip(names, outs, refs):
        assert got.shape == want.shape, f"{name}: {got.shape} vs {want.shape}"
        # Both sides use the backend's default f32 matmul precision; tolerance
        # allows for accumulation-order / MXU-pass differences.
        assert jnp.allclose(got, want, atol=2e-3, rtol=2e-3), f"mismatch: {name}"

    print("KERNEL_OK")
</pallas_src>

<mosaic_0001>
module attributes {stable_mosaic.version = 11 : i64} {
  func.func @passage_attention_kernel(%arg0: i32, %arg1: memref<2x64x128xf32, #tpu.memory_space<vmem>>, %arg2: memref<2x64xf32, #tpu.memory_space<vmem>>, %arg3: memref<2x128xf32, #tpu.memory_space<vmem>>, %arg4: memref<3x128x384xf32, #tpu.memory_space<vmem>>, %arg5: memref<1x384xf32, #tpu.memory_space<vmem>>, %arg6: memref<320x256xf32, #tpu.memory_space<vmem>>, %arg7: memref<1x256xf32, #tpu.memory_space<vmem>>, %arg8: memref<2x384xf32, #tpu.memory_space<vmem>>) attributes {dimension_semantics = [#tpu.dimension_semantics<parallel>], iteration_bounds = array<i64: 1>, scalar_prefetch = 0 : i64, scratch_operands = 0 : i64, tpu.core_type = #tpu.core_type<tc>, window_params = [{transform_indices = @transform_0, window_bounds = array<i64: 2, 64, 128>}, {transform_indices = @transform_1, window_bounds = array<i64: 2, 64>}, {transform_indices = @transform_2, window_bounds = array<i64: 2, 128>}, {pipeline_mode = #tpu.pipeline_mode<synchronous>, transform_indices = @transform_3, window_bounds = array<i64: 3, 128, 384>}, {pipeline_mode = #tpu.pipeline_mode<synchronous>, transform_indices = @transform_4, window_bounds = array<i64: 1, 384>}, {pipeline_mode = #tpu.pipeline_mode<synchronous>, transform_indices = @transform_5, window_bounds = array<i64: 320, 256>}, {pipeline_mode = #tpu.pipeline_mode<synchronous>, transform_indices = @transform_6, window_bounds = array<i64: 1, 256>}, {transform_indices = @transform_7, window_bounds = array<i64: 2, 384>}]} {
    %c0 = arith.constant 0 : index
    %c0_0 = arith.constant 0 : index
    %c0_1 = arith.constant 0 : index
    %0 = vector.load %arg1[%c0, %c0_0, %c0_1] : memref<2x64x128xf32, #tpu.memory_space<vmem>>, vector<2x64x128xf32>
    %1 = vector.extract_strided_slice %0 {offsets = [0, 32, 0], sizes = [2, 1, 128], strides = [1, 1, 1]} : vector<2x64x128xf32> to vector<2x1x128xf32>
    %2 = vector.shape_cast %1 : vector<2x1x128xf32> to vector<2x128xf32>
    %3 = vector.extract_strided_slice %0 {offsets = [0, 1, 0], sizes = [2, 31, 128], strides = [1, 1, 1]} : vector<2x64x128xf32> to vector<2x31x128xf32>
    %cst = arith.constant dense<0.000000e+00> : vector<2x128xf32>
    %4 = vector.multi_reduction <add>, %3, %cst [1] : vector<2x31x128xf32> to vector<2x128xf32>
    %5 = vector.extract_strided_slice %0 {offsets = [0, 33, 0], sizes = [2, 31, 128], strides = [1, 1, 1]} : vector<2x64x128xf32> to vector<2x31x128xf32>
    %cst_2 = arith.constant dense<0.000000e+00> : vector<2x128xf32>
    %6 = vector.multi_reduction <add>, %5, %cst_2 [1] : vector<2x31x128xf32> to vector<2x128xf32>
    %c0_3 = arith.constant 0 : index
    %c0_4 = arith.constant 0 : index
    %c0_5 = arith.constant 0 : index
    %7 = vector.load %arg4[%c0_3, %c0_4, %c0_5] : memref<3x128x384xf32, #tpu.memory_space<vmem>>, vector<3x128x384xf32>
    %8 = vector.extract_strided_slice %7 {offsets = [0, 0, 0], sizes = [1, 128, 384], strides = [1, 1, 1]} : vector<3x128x384xf32> to vector<1x128x384xf32>
    %9 = vector.shape_cast %8 : vector<1x128x384xf32> to vector<128x384xf32>
    %cst_6 = arith.constant dense<0.000000e+00> : vector<2x384xf32>
    %10 = tpu.matmul %2, %9, %cst_6 {dimension_numbers = #tpu.dot_dimension_numbers<[1], [0], [0], [1], [0, 0, 1, 1], [], []>} : vector<2x128xf32>, vector<128x384xf32>, vector<2x384xf32> -> vector<2x384xf32>
    %11 = vector.extract_strided_slice %7 {offsets = [1, 0, 0], sizes = [1, 128, 384], strides = [1, 1, 1]} : vector<3x128x384xf32> to vector<1x128x384xf32>
    %12 = vector.shape_cast %11 : vector<1x128x384xf32> to vector<128x384xf32>
    %cst_7 = arith.constant dense<0.000000e+00> : vector<2x384xf32>
    %13 = tpu.matmul %4, %12, %cst_7 {dimension_numbers = #tpu.dot_dimension_numbers<[1], [0], [0], [1], [0, 0, 1, 1], [], []>} : vector<2x128xf32>, vector<128x384xf32>, vector<2x384xf32> -> vector<2x384xf32>
    %14 = arith.addf %10, %13 : vector<2x384xf32>
    %15 = vector.extract_strided_slice %7 {offsets = [2, 0, 0], sizes = [1, 128, 384], strides = [1, 1, 1]} : vector<3x128x384xf32> to vector<1x128x384xf32>
    %16 = vector.shape_cast %15 : vector<1x128x384xf32> to vector<128x384xf32>
    %cst_8 = arith.constant dense<0.000000e+00> : vector<2x384xf32>
    %17 = tpu.matmul %6, %16, %cst_8 {dimension_numbers = #tpu.dot_dimension_numbers<[1], [0], [0], [1], [0, 0, 1, 1], [], []>} : vector<2x128xf32>, vector<128x384xf32>, vector<2x384xf32> -> vector<2x384xf32>
    %18 = arith.addf %14, %17 : vector<2x384xf32>
    %c0_9 = arith.constant 0 : index
    %c0_10 = arith.constant 0 : index
    %19 = vector.load %arg5[%c0_9, %c0_10] : memref<1x384xf32, #tpu.memory_space<vmem>>, vector<1x384xf32>
    %20 = vector.broadcast %19 : vector<1x384xf32> to vector<2x384xf32>
    %21 = arith.addf %18, %20 : vector<2x384xf32>
    %22 = vector.extract_strided_slice %21 {offsets = [0, 0], sizes = [2, 64], strides = [1, 1]} : vector<2x384xf32> to vector<2x64xf32>
    %23 = vector.extract_strided_slice %21 {offsets = [0, 64], sizes = [2, 64], strides = [1, 1]} : vector<2x384xf32> to vector<2x64xf32>
    %24 = vector.extract_strided_slice %21 {offsets = [0, 128], sizes = [2, 64], strides = [1, 1]} : vector<2x384xf32> to vector<2x64xf32>
    %25 = vector.extract_strided_slice %21 {offsets = [0, 192], sizes = [2, 64], strides = [1, 1]} : vector<2x384xf32> to vector<2x64xf32>
    %26 = vector.extract_strided_slice %21 {offsets = [0, 256], sizes = [2, 128], strides = [1, 1]} : vector<2x384xf32> to vector<2x128xf32>
    %cst_11 = arith.constant 5.000000e-01 : f32
    %27 = vector.broadcast %cst_11 : f32 to vector<2x64xf32>
    %28 = arith.mulf %27, %23 : vector<2x64xf32>
    %29 = math.exp %28 : vector<2x64xf32>
    %c0_12 = arith.constant 0 : index
    %c0_13 = arith.constant 0 : index
    %30 = vector.load %arg2[%c0_12, %c0_13] : memref<2x64xf32, #tpu.memory_space<vmem>>, vector<2x64xf32>
    %31 = arith.mulf %29, %30 : vector<2x64xf32>
    %32 = arith.addf %22, %31 : vector<2x64xf32>
    %c0_14 = arith.constant 0 : index
    %c0_15 = arith.constant 0 : index
    %33 = vector.load %arg3[%c0_14, %c0_15] : memref<2x128xf32, #tpu.memory_space<vmem>>, vector<2x128xf32>
    %34 = arith.mulf %26, %33 : vector<2x128xf32>
    %c0_16 = arith.constant 0 : index
    %c0_17 = arith.constant 0 : index
    %35 = vector.load %arg6[%c0_16, %c0_17] : memref<320x256xf32, #tpu.memory_space<vmem>>, vector<320x256xf32>
    %36 = vector.extract_strided_slice %35 {offsets = [0, 0], sizes = [64, 256], strides = [1, 1]} : vector<320x256xf32> to vector<64x256xf32>
    %cst_18 = arith.constant dense<0.000000e+00> : vector<2x256xf32>
    %37 = tpu.matmul %32, %36, %cst_18 {dimension_numbers = #tpu.dot_dimension_numbers<[1], [0], [0], [1], [0, 0, 1, 1], [], []>} : vector<2x64xf32>, vector<64x256xf32>, vector<2x256xf32> -> vector<2x256xf32>
    %38 = vector.extract_strided_slice %35 {offsets = [64, 0], sizes = [64, 256], strides = [1, 1]} : vector<320x256xf32> to vector<64x256xf32>
    %cst_19 = arith.constant dense<0.000000e+00> : vector<2x256xf32>
    %39 = tpu.matmul %24, %38, %cst_19 {dimension_numbers = #tpu.dot_dimension_numbers<[1], [0], [0], [1], [0, 0, 1, 1], [], []>} : vector<2x64xf32>, vector<64x256xf32>, vector<2x256xf32> -> vector<2x256xf32>
    %40 = arith.addf %37, %39 : vector<2x256xf32>
    %41 = vector.extract_strided_slice %35 {offsets = [128, 0], sizes = [64, 256], strides = [1, 1]} : vector<320x256xf32> to vector<64x256xf32>
    %cst_20 = arith.constant dense<0.000000e+00> : vector<2x256xf32>
    %42 = tpu.matmul %25, %41, %cst_20 {dimension_numbers = #tpu.dot_dimension_numbers<[1], [0], [0], [1], [0, 0, 1, 1], [], []>} : vector<2x64xf32>, vector<64x256xf32>, vector<2x256xf32> -> vector<2x256xf32>
    %43 = arith.addf %40, %42 : vector<2x256xf32>
    %44 = vector.extract_strided_slice %35 {offsets = [192, 0], sizes = [128, 256], strides = [1, 1]} : vector<320x256xf32> to vector<128x256xf32>
    %cst_21 = arith.constant dense<0.000000e+00> : vector<2x256xf32>
    %45 = tpu.matmul %34, %44, %cst_21 {dimension_numbers = #tpu.dot_dimension_numbers<[1], [0], [0], [1], [0, 0, 1, 1], [], []>} : vector<2x128xf32>, vector<128x256xf32>, vector<2x256xf32> -> vector<2x256xf32>
    %46 = arith.addf %43, %45 : vector<2x256xf32>
    %c0_22 = arith.constant 0 : index
    %c0_23 = arith.constant 0 : index
    %47 = vector.load %arg7[%c0_22, %c0_23] : memref<1x256xf32, #tpu.memory_space<vmem>>, vector<1x256xf32>
    %48 = vector.broadcast %47 : vector<1x256xf32> to vector<2x256xf32>
    %49 = arith.addf %46, %48 : vector<2x256xf32>
    %50 = vector.extract_strided_slice %21 {offsets = [0, 0], sizes = [2, 128], strides = [1, 1]} : vector<2x384xf32> to vector<2x128xf32>
    %c0_24 = arith.constant 0 : index
    %c0_25 = arith.constant 0 : index
    %51 = vector.load %arg8[%c0_24, %c0_25] : memref<2x384xf32, #tpu.memory_space<vmem>>, vector<2x128xf32>
    tpu.vector_store %arg8[%c0_24, %c0_25], %50 {strides = array<i32>} : memref<2x384xf32, #tpu.memory_space<vmem>>, vector<2x128xf32>,
    %52 = vector.extract_strided_slice %49 {offsets = [0, 0], sizes = [2, 128], strides = [1, 1]} : vector<2x256xf32> to vector<2x128xf32>
    %c0_26 = arith.constant 0 : index
    %c128 = arith.constant 128 : index
    %53 = vector.load %arg8[%c0_26, %c128] : memref<2x384xf32, #tpu.memory_space<vmem>>, vector<2x128xf32>
    tpu.vector_store %arg8[%c0_26, %c128], %52 {strides = array<i32>} : memref<2x384xf32, #tpu.memory_space<vmem>>, vector<2x128xf32>,
    %54 = vector.extract_strided_slice %49 {offsets = [0, 128], sizes = [2, 128], strides = [1, 1]} : vector<2x256xf32> to vector<2x128xf32>
    %55 = arith.negf %54 : vector<2x128xf32>
    %56 = math.exp %55 : vector<2x128xf32>
    %cst_27 = arith.constant 1.000000e+00 : f32
    %57 = vector.broadcast %cst_27 : f32 to vector<2x128xf32>
    %58 = arith.addf %57, %56 : vector<2x128xf32>
    %59 = arith.divf %57, %58 : vector<2x128xf32>
    %c0_28 = arith.constant 0 : index
    %c256 = arith.constant 256 : index
    %60 = vector.load %arg8[%c0_28, %c256] : memref<2x384xf32, #tpu.memory_space<vmem>>, vector<2x128xf32>
    tpu.vector_store %arg8[%c0_28, %c256], %59 {strides = array<i32>} : memref<2x384xf32, #tpu.memory_space<vmem>>, vector<2x128xf32>,
    return
  }
  func.func @transform_0(%arg0: i32) -> (i32, i32, i32) {
    %c2_i32 = arith.constant 2 : i32
    %c0_i32 = arith.constant 0 : i32
    %c0_i32_0 = arith.constant 0 : i32
    return %arg0, %c2_i32, %c0_i32 : i32, i32, i32
  }
  func.func @transform_1(%arg0: i32) -> (i32, i32) {
    %c0_i32 = arith.constant 0 : i32
    %c0_i32_0 = arith.constant 0 : i32
    return %arg0, %c0_i32 : i32, i32
  }
  func.func @transform_2(%arg0: i32) -> (i32, i32) {
    %c0_i32 = arith.constant 0 : i32
    %c0_i32_0 = arith.constant 0 : i32
    return %arg0, %c0_i32 : i32, i32
  }
  func.func @transform_3(%arg0: i32) -> (i32, i32, i32) {
    %c0_i32 = arith.constant 0 : i32
    %c0_i32_0 = arith.constant 0 : i32
    %c0_i32_1 = arith.constant 0 : i32
    %c0_i32_2 = arith.constant 0 : i32
    return %c0_i32, %c0_i32_0, %c0_i32_1 : i32, i32, i32
  }
  func.func @transform_4(%arg0: i32) -> (i32, i32) {
    %c0_i32 = arith.constant 0 : i32
    %c0_i32_0 = arith.constant 0 : i32
    %c0_i32_1 = arith.constant 0 : i32
    return %c0_i32, %c0_i32_0 : i32, i32
  }
  func.func @transform_5(%arg0: i32) -> (i32, i32) {
    %c0_i32 = arith.constant 0 : i32
    %c0_i32_0 = arith.constant 0 : i32
    %c0_i32_1 = arith.constant 0 : i32
    return %c0_i32, %c0_i32_0 : i32, i32
  }
  func.func @transform_6(%arg0: i32) -> (i32, i32) {
    %c0_i32 = arith.constant 0 : i32
    %c0_i32_0 = arith.constant 0 : i32
    %c0_i32_1 = arith.constant 0 : i32
    return %c0_i32, %c0_i32_0 : i32, i32
  }
  func.func @transform_7(%arg0: i32) -> (i32, i32) {
    %c0_i32 = arith.constant 0 : i32
    %c0_i32_0 = arith.constant 0 : i32
    return %arg0, %c0_i32 : i32, i32
  }
}

module attributes {stable_mosaic.version = 11 : i64} {
  func.func @passage_attention_kernel(%arg0: i32, %arg1: memref<2x64x128xf32, #tpu.memory_space<vmem>>, %arg2: memref<2x64xf32, #tpu.memory_space<vmem>>, %arg3: memref<2x128xf32, #tpu.memory_space<vmem>>, %arg4: memref<3x128x384xf32, #tpu.memory_space<vmem>>, %arg5: memref<1x384xf32, #tpu.memory_space<vmem>>, %arg6: memref<320x256xf32, #tpu.memory_space<vmem>>, %arg7: memref<1x256xf32, #tpu.memory_space<vmem>>, %arg8: memref<2x384xf32, #tpu.memory_space<vmem>>) attributes {dimension_semantics = [#tpu.dimension_semantics<parallel>], iteration_bounds = array<i64: 1>, scalar_prefetch = 0 : i64, scratch_operands = 0 : i64, tpu.core_type = #tpu.core_type<tc>, window_params = [{transform_indices = @transform_0, window_bounds = array<i64: 2, 64, 128>}, {transform_indices = @transform_1, window_bounds = array<i64: 2, 64>}, {transform_indices = @transform_2, window_bounds = array<i64: 2, 128>}, {pipeline_mode = #tpu.pipeline_mode<synchronous>, transform_indices = @transform_3, window_bounds = array<i64: 3, 128, 384>}, {pipeline_mode = #tpu.pipeline_mode<synchronous>, transform_indices = @transform_4, window_bounds = array<i64: 1, 384>}, {pipeline_mode = #tpu.pipeline_mode<synchronous>, transform_indices = @transform_5, window_bounds = array<i64: 320, 256>}, {pipeline_mode = #tpu.pipeline_mode<synchronous>, transform_indices = @transform_6, window_bounds = array<i64: 1, 256>}, {transform_indices = @transform_7, window_bounds = array<i64: 2, 384>}]} {
    %c0 = arith.constant 0 : index
    %c0_0 = arith.constant 0 : index
    %c0_1 = arith.constant 0 : index
    %0 = vector.load %arg1[%c0, %c0_0, %c0_1] : memref<2x64x128xf32, #tpu.memory_space<vmem>>, vector<2x64x128xf32>
    %1 = vector.extract_strided_slice %0 {offsets = [0, 32, 0], sizes = [2, 1, 128], strides = [1, 1, 1]} : vector<2x64x128xf32> to vector<2x1x128xf32>
    %2 = vector.shape_cast %1 : vector<2x1x128xf32> to vector<2x128xf32>
    %3 = vector.extract_strided_slice %0 {offsets = [0, 1, 0], sizes = [2, 31, 128], strides = [1, 1, 1]} : vector<2x64x128xf32> to vector<2x31x128xf32>
    %cst = arith.constant dense<0.000000e+00> : vector<2x128xf32>
    %4 = vector.multi_reduction <add>, %3, %cst [1] : vector<2x31x128xf32> to vector<2x128xf32>
    %5 = vector.extract_strided_slice %0 {offsets = [0, 33, 0], sizes = [2, 31, 128], strides = [1, 1, 1]} : vector<2x64x128xf32> to vector<2x31x128xf32>
    %cst_2 = arith.constant dense<0.000000e+00> : vector<2x128xf32>
    %6 = vector.multi_reduction <add>, %5, %cst_2 [1] : vector<2x31x128xf32> to vector<2x128xf32>
    %c0_3 = arith.constant 0 : index
    %c0_4 = arith.constant 0 : index
    %c0_5 = arith.constant 0 : index
    %7 = vector.load %arg4[%c0_3, %c0_4, %c0_5] : memref<3x128x384xf32, #tpu.memory_space<vmem>>, vector<3x128x384xf32>
    %8 = vector.extract_strided_slice %7 {offsets = [0, 0, 0], sizes = [1, 128, 384], strides = [1, 1, 1]} : vector<3x128x384xf32> to vector<1x128x384xf32>
    %9 = vector.shape_cast %8 : vector<1x128x384xf32> to vector<128x384xf32>
    %cst_6 = arith.constant dense<0.000000e+00> : vector<2x384xf32>
    %10 = tpu.matmul %2, %9, %cst_6 {dimension_numbers = #tpu.dot_dimension_numbers<[1], [0], [0], [1], [0, 0, 1, 1], [], []>} : vector<2x128xf32>, vector<128x384xf32>, vector<2x384xf32> -> vector<2x384xf32>
    %11 = vector.extract_strided_slice %7 {offsets = [1, 0, 0], sizes = [1, 128, 384], strides = [1, 1, 1]} : vector<3x128x384xf32> to vector<1x128x384xf32>
    %12 = vector.shape_cast %11 : vector<1x128x384xf32> to vector<128x384xf32>
    %cst_7 = arith.constant dense<0.000000e+00> : vector<2x384xf32>
    %13 = tpu.matmul %4, %12, %cst_7 {dimension_numbers = #tpu.dot_dimension_numbers<[1], [0], [0], [1], [0, 0, 1, 1], [], []>} : vector<2x128xf32>, vector<128x384xf32>, vector<2x384xf32> -> vector<2x384xf32>
    %14 = arith.addf %10, %13 : vector<2x384xf32>
    %15 = vector.extract_strided_slice %7 {offsets = [2, 0, 0], sizes = [1, 128, 384], strides = [1, 1, 1]} : vector<3x128x384xf32> to vector<1x128x384xf32>
    %16 = vector.shape_cast %15 : vector<1x128x384xf32> to vector<128x384xf32>
    %cst_8 = arith.constant dense<0.000000e+00> : vector<2x384xf32>
    %17 = tpu.matmul %6, %16, %cst_8 {dimension_numbers = #tpu.dot_dimension_numbers<[1], [0], [0], [1], [0, 0, 1, 1], [], []>} : vector<2x128xf32>, vector<128x384xf32>, vector<2x384xf32> -> vector<2x384xf32>
    %18 = arith.addf %14, %17 : vector<2x384xf32>
    %c0_9 = arith.constant 0 : index
    %c0_10 = arith.constant 0 : index
    %19 = vector.load %arg5[%c0_9, %c0_10] : memref<1x384xf32, #tpu.memory_space<vmem>>, vector<1x384xf32>
    %20 = vector.broadcast %19 : vector<1x384xf32> to vector<2x384xf32>
    %21 = arith.addf %18, %20 : vector<2x384xf32>
    %22 = vector.extract_strided_slice %21 {offsets = [0, 0], sizes = [2, 64], strides = [1, 1]} : vector<2x384xf32> to vector<2x64xf32>
    %23 = vector.extract_strided_slice %21 {offsets = [0, 64], sizes = [2, 64], strides = [1, 1]} : vector<2x384xf32> to vector<2x64xf32>
    %24 = vector.extract_strided_slice %21 {offsets = [0, 128], sizes = [2, 64], strides = [1, 1]} : vector<2x384xf32> to vector<2x64xf32>
    %25 = vector.extract_strided_slice %21 {offsets = [0, 192], sizes = [2, 64], strides = [1, 1]} : vector<2x384xf32> to vector<2x64xf32>
    %26 = vector.extract_strided_slice %21 {offsets = [0, 256], sizes = [2, 128], strides = [1, 1]} : vector<2x384xf32> to vector<2x128xf32>
    %cst_11 = arith.constant 5.000000e-01 : f32
    %27 = vector.broadcast %cst_11 : f32 to vector<2x64xf32>
    %28 = arith.mulf %27, %23 : vector<2x64xf32>
    %29 = math.exp %28 : vector<2x64xf32>
    %c0_12 = arith.constant 0 : index
    %c0_13 = arith.constant 0 : index
    %30 = vector.load %arg2[%c0_12, %c0_13] : memref<2x64xf32, #tpu.memory_space<vmem>>, vector<2x64xf32>
    %31 = arith.mulf %29, %30 : vector<2x64xf32>
    %32 = arith.addf %22, %31 : vector<2x64xf32>
    %c0_14 = arith.constant 0 : index
    %c0_15 = arith.constant 0 : index
    %33 = vector.load %arg3[%c0_14, %c0_15] : memref<2x128xf32, #tpu.memory_space<vmem>>, vector<2x128xf32>
    %34 = arith.mulf %26, %33 : vector<2x128xf32>
    %c0_16 = arith.constant 0 : index
    %c0_17 = arith.constant 0 : index
    %35 = vector.load %arg6[%c0_16, %c0_17] : memref<320x256xf32, #tpu.memory_space<vmem>>, vector<320x256xf32>
    %36 = vector.extract_strided_slice %35 {offsets = [0, 0], sizes = [64, 256], strides = [1, 1]} : vector<320x256xf32> to vector<64x256xf32>
    %cst_18 = arith.constant dense<0.000000e+00> : vector<2x256xf32>
    %37 = tpu.matmul %32, %36, %cst_18 {dimension_numbers = #tpu.dot_dimension_numbers<[1], [0], [0], [1], [0, 0, 1, 1], [], []>} : vector<2x64xf32>, vector<64x256xf32>, vector<2x256xf32> -> vector<2x256xf32>
    %38 = vector.extract_strided_slice %35 {offsets = [64, 0], sizes = [64, 256], strides = [1, 1]} : vector<320x256xf32> to vector<64x256xf32>
    %cst_19 = arith.constant dense<0.000000e+00> : vector<2x256xf32>
    %39 = tpu.matmul %24, %38, %cst_19 {dimension_numbers = #tpu.dot_dimension_numbers<[1], [0], [0], [1], [0, 0, 1, 1], [], []>} : vector<2x64xf32>, vector<64x256xf32>, vector<2x256xf32> -> vector<2x256xf32>
    %40 = arith.addf %37, %39 : vector<2x256xf32>
    %41 = vector.extract_strided_slice %35 {offsets = [128, 0], sizes = [64, 256], strides = [1, 1]} : vector<320x256xf32> to vector<64x256xf32>
    %cst_20 = arith.constant dense<0.000000e+00> : vector<2x256xf32>
    %42 = tpu.matmul %25, %41, %cst_20 {dimension_numbers = #tpu.dot_dimension_numbers<[1], [0], [0], [1], [0, 0, 1, 1], [], []>} : vector<2x64xf32>, vector<64x256xf32>, vector<2x256xf32> -> vector<2x256xf32>
    %43 = arith.addf %40, %42 : vector<2x256xf32>
    %44 = vector.extract_strided_slice %35 {offsets = [192, 0], sizes = [128, 256], strides = [1, 1]} : vector<320x256xf32> to vector<128x256xf32>
    %cst_21 = arith.constant dense<0.000000e+00> : vector<2x256xf32>
    %45 = tpu.matmul %34, %44, %cst_21 {dimension_numbers = #tpu.dot_dimension_numbers<[1], [0], [0], [1], [0, 0, 1, 1], [], []>} : vector<2x128xf32>, vector<128x256xf32>, vector<2x256xf32> -> vector<2x256xf32>
    %46 = arith.addf %43, %45 : vector<2x256xf32>
    %c0_22 = arith.constant 0 : index
    %c0_23 = arith.constant 0 : index
    %47 = vector.load %arg7[%c0_22, %c0_23] : memref<1x256xf32, #tpu.memory_space<vmem>>, vector<1x256xf32>
    %48 = vector.broadcast %47 : vector<1x256xf32> to vector<2x256xf32>
    %49 = arith.addf %46, %48 : vector<2x256xf32>
    %50 = vector.extract_strided_slice %21 {offsets = [0, 0], sizes = [2, 128], strides = [1, 1]} : vector<2x384xf32> to vector<2x128xf32>
    %c0_24 = arith.constant 0 : index
    %c0_25 = arith.constant 0 : index
    %51 = vector.load %arg8[%c0_24, %c0_25] : memref<2x384xf32, #tpu.memory_space<vmem>>, vector<2x128xf32>
    tpu.vector_store %arg8[%c0_24, %c0_25], %50 {strides = array<i32>} : memref<2x384xf32, #tpu.memory_space<vmem>>, vector<2x128xf32>,
    %52 = vector.extract_strided_slice %49 {offsets = [0, 0], sizes = [2, 128], strides = [1, 1]} : vector<2x256xf32> to vector<2x128xf32>
    %c0_26 = arith.constant 0 : index
    %c128 = arith.constant 128 : index
    %53 = vector.load %arg8[%c0_26, %c128] : memref<2x384xf32, #tpu.memory_space<vmem>>, vector<2x128xf32>
    tpu.vector_store %arg8[%c0_26, %c128], %52 {strides = array<i32>} : memref<2x384xf32, #tpu.memory_space<vmem>>, vector<2x128xf32>,
    %54 = vector.extract_strided_slice %49 {offsets = [0, 128], sizes = [2, 128], strides = [1, 1]} : vector<2x256xf32> to vector<2x128xf32>
    %55 = arith.negf %54 : vector<2x128xf32>
    %56 = math.exp %55 : vector<2x128xf32>
    %cst_27 = arith.constant 1.000000e+00 : f32
    %57 = vector.broadcast %cst_27 : f32 to vector<2x128xf32>
    %58 = arith.addf %57, %56 : vector<2x128xf32>
    %59 = arith.divf %57, %58 : vector<2x128xf32>
    %c0_28 = arith.constant 0 : index
    %c256 = arith.constant 256 : index
    %60 = vector.load %arg8[%c0_28, %c256] : memref<2x384xf32, #tpu.memory_space<vmem>>, vector<2x128xf32>
    tpu.vector_store %arg8[%c0_28, %c256], %59 {strides = array<i32>} : memref<2x384xf32, #tpu.memory_space<vmem>>, vector<2x128xf32>,
    return
  }
  func.func @transform_0(%arg0: i32) -> (i32, i32, i32) {
    %c2_i32 = arith.constant 2 : i32
    %c0_i32 = arith.constant 0 : i32
    %c0_i32_0 = arith.constant 0 : i32
    return %arg0, %c2_i32, %c0_i32 : i32, i32, i32
  }
  func.func @transform_1(%arg0: i32) -> (i32, i32) {
    %c0_i32 = arith.constant 0 : i32
    %c0_i32_0 = arith.constant 0 : i32
    return %arg0, %c0_i32 : i32, i32
  }
  func.func @transform_2(%arg0: i32) -> (i32, i32) {
    %c0_i32 = arith.constant 0 : i32
    %c0_i32_0 = arith.constant 0 : i32
    return %arg0, %c0_i32 : i32, i32
  }
  func.func @transform_3(%arg0: i32) -> (i32, i32, i32) {
    %c0_i32 = arith.constant 0 : i32
    %c0_i32_0 = arith.constant 0 : i32
    %c0_i32_1 = arith.constant 0 : i32
    %c0_i32_2 = arith.constant 0 : i32
    return %c0_i32, %c0_i32_0, %c0_i32_1 : i32, i32, i32
  }
  func.func @transform_4(%arg0: i32) -> (i32, i32) {
    %c0_i32 = arith.constant 0 : i32
    %c0_i32_0 = arith.constant 0 : i32
    %c0_i32_1 = arith.constant 0 : i32
    return %c0_i32, %c0_i32_0 : i32, i32
  }
  func.func @transform_5(%arg0: i32) -> (i32, i32) {
    %c0_i32 = arith.constant 0 : i32
    %c0_i32_0 = arith.constant 0 : i32
    %c0_i32_1 = arith.constant 0 : i32
    return %c0_i32, %c0_i32_0 : i32, i32
  }
  func.func @transform_6(%arg0: i32) -> (i32, i32) {
    %c0_i32 = arith.constant 0 : i32
    %c0_i32_0 = arith.constant 0 : i32
    %c0_i32_1 = arith.constant 0 : i32
    return %c0_i32, %c0_i32_0 : i32, i32
  }
  func.func @transform_7(%arg0: i32) -> (i32, i32) {
    %c0_i32 = arith.constant 0 : i32
    %c0_i32_0 = arith.constant 0 : i32
    return %arg0, %c0_i32 : i32, i32
  }
}

</mosaic_0001>

<llo_original>
// kernel: tpu_custom_call.1
$region0: #{tpu_custom_call.1}
  #allocation0 [shape = 'u32[]', space=smem, size = 0x4, offset = 0x4, fixed_abs, tag = 'smem constant byte address 0x4 - core index']
  #allocation1 [shape = 'u32[144,128]{1,0:T(1,128)}', space=vmem, size = 0x12000, scoped, tag = 'internal scratch']
  #allocation9 [shape = 's32[]', space=sflag, size = 0x4, offset = 0, fixed_abs, tag = 'sflag constant byte address 0x0 - dummy sync flag']
  %s0 = inlined_call_operand.hbm [shape: f32[2,192,128], index: 0, kind: input, shape index: {}]
  %s1 = inlined_call_operand.vmem [shape: f32[2,64], index: 1, kind: input, shape index: {}]
  %s2 = inlined_call_operand.vmem [shape: f32[2,128], index: 2, kind: input, shape index: {}]
  %s3 = inlined_call_operand.hbm [shape: f32[3,128,384], index: 3, kind: input, shape index: {}]
  %s4 = inlined_call_operand.vmem [shape: f32[1,384], index: 4, kind: input, shape index: {}]
  %s5 = inlined_call_operand.hbm [shape: f32[320,256], index: 5, kind: input, shape index: {}]
  %s6 = inlined_call_operand.vmem [shape: f32[1,256], index: 6, kind: input, shape index: {}]
  %s7 = inlined_call_operand.hbm [shape: f32[2,384], index: 7, kind: output, shape index: {}]
  %s8 = sld [smem:[#allocation0]]
  $region50: #{tpu_custom_call.1} parent=0
    _
  %s10 = ssub.s32 1, %s8
  %s11 = scalar_select 0, %s10, %s8
  $region1: #{tpu_custom_call.1} parent=0
    #allocation2 [shape = 'u8[65536]{0}', space=vmem, size = 0x10000, scoped, tag = 'input window, operand 0, single buffered']
    #allocation3 [shape = 's32[1]{0}', space=sflag, size = 0x4, scoped, tag = 'scoped memory for tpu_custom_call.1']
    #allocation4 [shape = 's32[1]{0}', space=sflag, size = 0x4, scoped, tag = 'scoped memory for tpu_custom_call.1']
    #allocation5 [shape = 'u8[589824]{0}', space=vmem, size = 0x90000, scoped, tag = 'input window, operand 3, single buffered']
    #allocation6 [shape = 's32[1]{0}', space=sflag, size = 0x4, scoped, tag = 'scoped memory for tpu_custom_call.1']
    #allocation7 [shape = 'u8[327680]{0}', space=vmem, size = 0x50000, scoped, tag = 'input window, operand 5, single buffered']
    #allocation8 [shape = 'u8[3072]{0}', space=vmem, size = 0xc00, scoped, tag = 'output window, operand 0, single buffered']
    %12 = vsyncpa [#allocation3], 0
    %13 = vsyncpa [#allocation6], 0
    %14 = vsyncpa [#allocation4], 0
    // Predicated region
    $region2: #{tpu_custom_call.1} parent=1 // pred_check
      _
    $region3: #{tpu_custom_call.1} parent=1 // pred_check_branch
      %16 = sbr.rel (0) target = $region5
    $region4: #{tpu_custom_call.1} parent=1 // pred_region
      #allocation10 [shape = 'u32[6]{0}', space=smem, size = 0x18, scoped, tag = 'DMA stride descriptor']
      %s18 = ssub.s32 2048, 2048
      %19 = vsyncadd [#allocation3], %s18
      %s20 = scalar_lea.hbm %s0, 2048
      %s22 = sshll.u32 1, 14
      %s23 = sxor.u32 4294967295, %s22
      %s25 = sld [smem:[#allocation0]]
      %s26 = sadd.s32 2, %s25
      %s28 = sshll.u32 7, 26
      %s29 = sxor.u32 4294967295, %s28
      %s30 = sand.u32 0, %s29
      %s31 = sshll.u32 %s26, 26
      %s32 = sor.u32 %s30, %s31
      %s33 = sshll.u32 [#allocation2], 4
      %s34 = int_to_ptr.vmem [resolvable:$true] %s33
      %40 = sst [smem:[#allocation10]] 3072
      %s41 = scalar_lea.smem [#allocation10], 1
      %42 = sst [smem:[%s41]] 1024
      %s43 = scalar_lea.smem [#allocation10], 2
      %44 = sst [smem:[%s43]] 8
      %s45 = scalar_lea.smem [#allocation10], 3
      %46 = sst [smem:[%s45]] 128
      %s47 = scalar_lea.smem [#allocation10], 4
      %48 = sst [smem:[%s47]] 128
      %s49 = scalar_lea.smem [#allocation10], 5
      %50 = sst [smem:[%s49]] 8
      %52 = dma.general %s20, 2048, %s34, [#allocation3], [#allocation9], [#allocation10], %s32, 0
    $region5: #{tpu_custom_call.1} parent=1 // pred_fallthru
      _
    // Predicated region
    $region6: #{tpu_custom_call.1} parent=1 // pred_check
      _
    $region7: #{tpu_custom_call.1} parent=1 // pred_check_branch
      %54 = sbr.rel (0) target = $region9
    $region8: #{tpu_custom_call.1} parent=1 // pred_region
      _
    $region9: #{tpu_custom_call.1} parent=1 // pred_fallthru
      _
    // Predicated region
    $region10: #{tpu_custom_call.1} parent=1 // pred_check
      _
    $region11: #{tpu_custom_call.1} parent=1 // pred_check_branch
      %56 = sbr.rel (0) target = $region13
    $region12: #{tpu_custom_call.1} parent=1 // pred_region
      _
    $region13: #{tpu_custom_call.1} parent=1 // pred_fallthru
      _
    // Predicated region
    $region14: #{tpu_custom_call.1} parent=1 // pred_check
      _
    $region15: #{tpu_custom_call.1} parent=1 // pred_check_branch
      %58 = sbr.rel (0) target = $region17
    $region16: #{tpu_custom_call.1} parent=1 // pred_region
      %s60 = ssub.s32 18432, 18432
      %61 = vsyncadd [#allocation6], %s60
      %s62 = sshll.u32 [#allocation5], 4
      %s63 = int_to_ptr.vmem [resolvable:$true] %s62
      %68 = dma.hbm_to_vmem [thread:$0]  %s3, 18432, %s63, [#allocation6], 384, 384, 24
    $region17: #{tpu_custom_call.1} parent=1 // pred_fallthru
      _
    // Predicated region
    $region18: #{tpu_custom_call.1} parent=1 // pred_check
      _
    $region19: #{tpu_custom_call.1} parent=1 // pred_check_branch
      %70 = sbr.rel (0) target = $region21
    $region20: #{tpu_custom_call.1} parent=1 // pred_region
      _
    $region21: #{tpu_custom_call.1} parent=1 // pred_fallthru
      _
    // Predicated region
    $region22: #{tpu_custom_call.1} parent=1 // pred_check
      _
    $region23: #{tpu_custom_call.1} parent=1 // pred_check_branch
      %72 = sbr.rel (0) target = $region25
    $region24: #{tpu_custom_call.1} parent=1 // pred_region
      %s74 = ssub.s32 10240, 10240
      %75 = vsyncadd [#allocation6], %s74
      %s76 = sshll.u32 [#allocation7], 4
      %s77 = int_to_ptr.vmem [resolvable:$true] %s76
      %82 = dma.hbm_to_vmem [thread:$0]  %s5, 10240, %s77, [#allocation6], 256, 256, 16
    $region25: #{tpu_custom_call.1} parent=1 // pred_fallthru
      _
    // Predicated region
    $region26: #{tpu_custom_call.1} parent=1 // pred_check
      _
    $region27: #{tpu_custom_call.1} parent=1 // pred_check_branch
      %84 = sbr.rel (0) target = $region29
    $region28: #{tpu_custom_call.1} parent=1 // pred_region
      _
    $region29: #{tpu_custom_call.1} parent=1 // pred_fallthru
      _
    // Predicated region
    $region30: #{tpu_custom_call.1} parent=1 // pred_check
      _
    $region31: #{tpu_custom_call.1} parent=1 // pred_check_branch
      %86 = sbr.rel (0) target = $region33
    $region32: #{tpu_custom_call.1} parent=1 // pred_region
      %87 = dma.done [#allocation3], 2048
    $region33: #{tpu_custom_call.1} parent=1 // pred_fallthru
      _
    // Predicated region
    $region34: #{tpu_custom_call.1} parent=1 // pred_check
      _
    $region35: #{tpu_custom_call.1} parent=1 // pred_check_branch
      %89 = sbr.rel (0) target = $region37
    $region36: #{tpu_custom_call.1} parent=1 // pred_region
      %90 = dma.done [#allocation6], 18432
    $region37: #{tpu_custom_call.1} parent=1 // pred_fallthru
      _
    // Predicated region
    $region38: #{tpu_custom_call.1} parent=1 // pred_check
      _
    $region39: #{tpu_custom_call.1} parent=1 // pred_check_branch
      %92 = sbr.rel (0) target = $region41
    $region40: #{tpu_custom_call.1} parent=1 // pred_region
      %93 = dma.done [#allocation6], 10240
    $region41: #{tpu_custom_call.1} parent=1 // pred_fallthru
      _
    %v94 = vld [vmem:[#allocation2] sm:$0xff]
    %v95 = vld [vmem:[#allocation2 + $0x8] sm:$0xff]
    %v96 = vld [vmem:[#allocation2 + $0x10] sm:$0xff]
    %v97 = vld [vmem:[#allocation2 + $0x18] sm:$0xff]
    %v98 = vld [vmem:[#allocation2 + $0x20] sm:$0xff]
    %v99 = vld [vmem:[#allocation2 + $0x28] sm:$0xff]
    %v100 = vld [vmem:[#allocation2 + $0x30] sm:$0xff]
    %v101 = vld [vmem:[#allocation2 + $0x38] sm:$0xff]
    %v102 = vld [vmem:[#allocation2 + $0x40] sm:$0xff]
    %v103 = vld [vmem:[#allocation2 + $0x48] sm:$0xff]
    %v104 = vld [vmem:[#allocation2 + $0x50] sm:$0xff]
    %v105 = vld [vmem:[#allocation2 + $0x58] sm:$0xff]
    %v106 = vld [vmem:[#allocation2 + $0x60] sm:$0xff]
    %v107 = vld [vmem:[#allocation2 + $0x68] sm:$0xff]
    %v108 = vld [vmem:[#allocation2 + $0x70] sm:$0xff]
    %v109 = vld [vmem:[#allocation2 + $0x78] sm:$0xff]
    %vm118 = vcmask 1046528
    %v119 = vrot.slane %v94, 1
    %v120 = vrot.slane %v95, 1
    %v121 = vsel %vm118, %v119, %v120
    %v122 = vrot.slane %v96, 1
    %v123 = vsel %vm118, %v120, %v122
    %v124 = vrot.slane %v97, 1
    %v125 = vsel %vm118, %v122, %v124
    %v126 = vrot.slane %v102, 1
    %v127 = vrot.slane %v103, 1
    %v128 = vsel %vm118, %v126, %v127
    %v129 = vrot.slane %v104, 1
    %v130 = vsel %vm118, %v127, %v129
    %v131 = vrot.slane %v105, 1
    %v132 = vsel %vm118, %v129, %v131
    %v141 = vadd.f32 %v121, %v123
    %v142 = vadd.f32 %v141, %v125
    %v143 = vsel %vm118, %v124, 0.0
    %v144 = vadd.f32 %v142, %v143
    %v145 = vrot.slane %v144, 4
    %v146 = vadd.f32 %v144, %v145
    %v147 = vrot.slane %v146, 2
    %v148 = vadd.f32 %v146, %v147
    %v149 = vrot.slane %v148, 1
    %v150 = vadd.f32 %v148, %v149
    %v151 = vadd.f32 %v128, %v130
    %v152 = vadd.f32 %v151, %v132
    %v153 = vsel %vm118, %v131, 0.0
    %v154 = vadd.f32 %v152, %v153
    %v155 = vrot.slane %v154, 4
    %v156 = vadd.f32 %v154, %v155
    %v157 = vrot.slane %v156, 2
    %v158 = vadd.f32 %v156, %v157
    %v159 = vrot.slane %v158, 1
    %v160 = vadd.f32 %v158, %v159
    %v169 = vrot.slane %v98, 1
    %v170 = vrot.slane %v99, 1
    %v171 = vsel %vm118, %v169, %v170
    %v172 = vrot.slane %v100, 1
    %v173 = vsel %vm118, %v170, %v172
    %v174 = vrot.slane %v101, 1
    %v175 = vsel %vm118, %v172, %v174
    %v176 = vrot.slane %v106, 1
    %v177 = vrot.slane %v107, 1
    %v178 = vsel %vm118, %v176, %v177
    %v179 = vrot.slane %v108, 1
    %v180 = vsel %vm118, %v177, %v179
    %v181 = vrot.slane %v109, 1
    %v182 = vsel %vm118, %v179, %v181
    %v191 = vadd.f32 %v171, %v173
    %v192 = vadd.f32 %v191, %v175
    %v193 = vsel %vm118, %v174, 0.0
    %v194 = vadd.f32 %v192, %v193
    %v195 = vrot.slane %v194, 4
    %v196 = vadd.f32 %v194, %v195
    %v197 = vrot.slane %v196, 2
    %v198 = vadd.f32 %v196, %v197
    %v199 = vrot.slane %v198, 1
    %v200 = vadd.f32 %v198, %v199
    %v201 = vadd.f32 %v178, %v180
    %v202 = vadd.f32 %v201, %v182
    %v203 = vsel %vm118, %v181, 0.0
    %v204 = vadd.f32 %v202, %v203
    %v205 = vrot.slane %v204, 4
    %v206 = vadd.f32 %v204, %v205
    %v207 = vrot.slane %v206, 2
    %v208 = vadd.f32 %v206, %v207
    %v209 = vrot.slane %v208, 1
    %v210 = vadd.f32 %v208, %v209
    %v211 = vld [vmem:[#allocation5] sm:$0xff]
    %v212 = vld [vmem:[#allocation5 + $0x8] sm:$0xff]
    %v213 = vld [vmem:[#allocation5 + $0x10] sm:$0xff]
    %v214 = vld [vmem:[#allocation5 + $0x18] sm:$0xff]
    %v215 = vld [vmem:[#allocation5 + $0x20] sm:$0xff]
    %v216 = vld [vmem:[#allocation5 + $0x28] sm:$0xff]
    %v217 = vld [vmem:[#allocation5 + $0x30] sm:$0xff]
    %v218 = vld [vmem:[#allocation5 + $0x38] sm:$0xff]
    %v219 = vld [vmem:[#allocation5 + $0x40] sm:$0xff]
    %v220 = vld [vmem:[#allocation5 + $0x48] sm:$0xff]
    %v221 = vld [vmem:[#allocation5 + $0x50] sm:$0xff]
    %v222 = vld [vmem:[#allocation5 + $0x58] sm:$0xff]
    %v223 = vld [vmem:[#allocation5 + $0x60] sm:$0xff]
    %v224 = vld [vmem:[#allocation5 + $0x68] sm:$0xff]
    %v225 = vld [vmem:[#allocation5 + $0x70] sm:$0xff]
    %v226 = vld [vmem:[#allocation5 + $0x78] sm:$0xff]
    %v227 = vld [vmem:[#allocation5 + $0x80] sm:$0xff]
    %v228 = vld [vmem:[#allocation5 + $0x88] sm:$0xff]
    %v229 = vld [vmem:[#allocation5 + $0x90] sm:$0xff]
    %v230 = vld [vmem:[#allocation5 + $0x98] sm:$0xff]
    %v231 = vld [vmem:[#allocation5 + $0xa0] sm:$0xff]
    %v232 = vld [vmem:[#allocation5 + $0xa8] sm:$0xff]
    %v233 = vld [vmem:[#allocation5 + $0xb0] sm:$0xff]
    %v234 = vld [vmem:[#allocation5 + $0xb8] sm:$0xff]
    %v235 = vld [vmem:[#allocation5 + $0xc0] sm:$0xff]
    %v236 = vld [vmem:[#allocation5 + $0xc8] sm:$0xff]
    %v237 = vld [vmem:[#allocation5 + $0xd0] sm:$0xff]
    %v238 = vld [vmem:[#allocation5 + $0xd8] sm:$0xff]
    %v239 = vld [vmem:[#allocation5 + $0xe0] sm:$0xff]
    %v240 = vld [vmem:[#allocation5 + $0xe8] sm:$0xff]
    %v241 = vld [vmem:[#allocation5 + $0xf0] sm:$0xff]
    %v242 = vld [vmem:[#allocation5 + $0xf8] sm:$0xff]
    %v243 = vld [vmem:[#allocation5 + $0x100] sm:$0xff]
    %v244 = vld [vmem:[#allocation5 + $0x108] sm:$0xff]
    %v245 = vld [vmem:[#allocation5 + $0x110] sm:$0xff]
    %v246 = vld [vmem:[#allocation5 + $0x118] sm:$0xff]
    %v247 = vld [vmem:[#allocation5 + $0x120] sm:$0xff]
    %v248 = vld [vmem:[#allocation5 + $0x128] sm:$0xff]
    %v249 = vld [vmem:[#allocation5 + $0x130] sm:$0xff]
    %v250 = vld [vmem:[#allocation5 + $0x138] sm:$0xff]
    %v251 = vld [vmem:[#allocation5 + $0x140] sm:$0xff]
    %v252 = vld [vmem:[#allocation5 + $0x148] sm:$0xff]
    %v253 = vld [vmem:[#allocation5 + $0x150] sm:$0xff]
    %v254 = vld [vmem:[#allocation5 + $0x158] sm:$0xff]
    %v255 = vld [vmem:[#allocation5 + $0x160] sm:$0xff]
    %v256 = vld [vmem:[#allocation5 + $0x168] sm:$0xff]
    %v257 = vld [vmem:[#allocation5 + $0x170] sm:$0xff]
    %v258 = vld [vmem:[#allocation5 + $0x178] sm:$0xff]
    %v259 = vld [vmem:[#allocation5 + $0x180] sm:$0xff]
    %v260 = vld [vmem:[#allocation5 + $0x188] sm:$0xff]
    %v261 = vld [vmem:[#allocation5 + $0x190] sm:$0xff]
    %v262 = vld [vmem:[#allocation5 + $0x198] sm:$0xff]
    %v263 = vld [vmem:[#allocation5 + $0x1a0] sm:$0xff]
    %v264 = vld [vmem:[#allocation5 + $0x1a8] sm:$0xff]
    %v265 = vld [vmem:[#allocation5 + $0x1b0] sm:$0xff]
    %v266 = vld [vmem:[#allocation5 + $0x1b8] sm:$0xff]
    %v267 = vld [vmem:[#allocation5 + $0x1c0] sm:$0xff]
    %v268 = vld [vmem:[#allocation5 + $0x1c8] sm:$0xff]
    %v269 = vld [vmem:[#allocation5 + $0x1d0] sm:$0xff]
    %v270 = vld [vmem:[#allocation5 + $0x1d8] sm:$0xff]
    %v271 = vld [vmem:[#allocation5 + $0x1e0] sm:$0xff]
    %v272 = vld [vmem:[#allocation5 + $0x1e8] sm:$0xff]
    %v273 = vld [vmem:[#allocation5 + $0x1f0] sm:$0xff]
    %v274 = vld [vmem:[#allocation5 + $0x1f8] sm:$0xff]
    %v275 = vld [vmem:[#allocation5 + $0x200] sm:$0xff]
    %v276 = vld [vmem:[#allocation5 + $0x208] sm:$0xff]
    %v277 = vld [vmem:[#allocation5 + $0x210] sm:$0xff]
    %v278 = vld [vmem:[#allocation5 + $0x218] sm:$0xff]
    %v279 = vld [vmem:[#allocation5 + $0x220] sm:$0xff]
    %v280 = vld [vmem:[#allocation5 + $0x228] sm:$0xff]
    %v281 = vld [vmem:[#allocation5 + $0x230] sm:$0xff]
    %v282 = vld [vmem:[#allocation5 + $0x238] sm:$0xff]
    %v283 = vld [vmem:[#allocation5 + $0x240] sm:$0xff]
    %v284 = vld [vmem:[#allocation5 + $0x248] sm:$0xff]
    %v285 = vld [vmem:[#allocation5 + $0x250] sm:$0xff]
    %v286 = vld [vmem:[#allocation5 + $0x258] sm:$0xff]
    %v287 = vld [vmem:[#allocation5 + $0x260] sm:$0xff]
    %v288 = vld [vmem:[#allocation5 + $0x268] sm:$0xff]
    %v289 = vld [vmem:[#allocation5 + $0x270] sm:$0xff]
    %v290 = vld [vmem:[#allocation5 + $0x278] sm:$0xff]
    %v291 = vld [vmem:[#allocation5 + $0x280] sm:$0xff]
    %v292 = vld [vmem:[#allocation5 + $0x288] sm:$0xff]
    %v293 = vld [vmem:[#allocation5 + $0x290] sm:$0xff]
    %v294 = vld [vmem:[#allocation5 + $0x298] sm:$0xff]
    %v295 = vld [vmem:[#allocation5 + $0x2a0] sm:$0xff]
    %v296 = vld [vmem:[#allocation5 + $0x2a8] sm:$0xff]
    %v297 = vld [vmem:[#allocation5 + $0x2b0] sm:$0xff]
    %v298 = vld [vmem:[#allocation5 + $0x2b8] sm:$0xff]
    %v299 = vld [vmem:[#allocation5 + $0x2c0] sm:$0xff]
    %v300 = vld [vmem:[#allocation5 + $0x2c8] sm:$0xff]
    %v301 = vld [vmem:[#allocation5 + $0x2d0] sm:$0xff]
    %v302 = vld [vmem:[#allocation5 + $0x2d8] sm:$0xff]
    %v303 = vld [vmem:[#allocation5 + $0x2e0] sm:$0xff]
    %v304 = vld [vmem:[#allocation5 + $0x2e8] sm:$0xff]
    %v305 = vld [vmem:[#allocation5 + $0x2f0] sm:$0xff]
    %v306 = vld [vmem:[#allocation5 + $0x2f8] sm:$0xff]
    %v307 = vld [vmem:[#allocation5 + $0x300] sm:$0xff]
    %v308 = vld [vmem:[#allocation5 + $0x308] sm:$0xff]
    %v309 = vld [vmem:[#allocation5 + $0x310] sm:$0xff]
    %v310 = vld [vmem:[#allocation5 + $0x318] sm:$0xff]
    %v311 = vld [vmem:[#allocation5 + $0x320] sm:$0xff]
    %v312 = vld [vmem:[#allocation5 + $0x328] sm:$0xff]
    %v313 = vld [vmem:[#allocation5 + $0x330] sm:$0xff]
    %v314 = vld [vmem:[#allocation5 + $0x338] sm:$0xff]
    %v315 = vld [vmem:[#allocation5 + $0x340] sm:$0xff]
    %v316 = vld [vmem:[#allocation5 + $0x348] sm:$0xff]
    %v317 = vld [vmem:[#allocation5 + $0x350] sm:$0xff]
    %v318 = vld [vmem:[#allocation5 + $0x358] sm:$0xff]
    %v319 = vld [vmem:[#allocation5 + $0x360] sm:$0xff]
    %v320 = vld [vmem:[#allocation5 + $0x368] sm:$0xff]
    %v321 = vld [vmem:[#allocation5 + $0x370] sm:$0xff]
    %v322 = vld [vmem:[#allocation5 + $0x378] sm:$0xff]
    %v323 = vld [vmem:[#allocation5 + $0x380] sm:$0xff]
    %v324 = vld [vmem:[#allocation5 + $0x388] sm:$0xff]
    %v325 = vld [vmem:[#allocation5 + $0x390] sm:$0xff]
    %v326 = vld [vmem:[#allocation5 + $0x398] sm:$0xff]
    %v327 = vld [vmem:[#allocation5 + $0x3a0] sm:$0xff]
    %v328 = vld [vmem:[#allocation5 + $0x3a8] sm:$0xff]
    %v329 = vld [vmem:[#allocation5 + $0x3b0] sm:$0xff]
    %v330 = vld [vmem:[#allocation5 + $0x3b8] sm:$0xff]
    %v331 = vld [vmem:[#allocation5 + $0x3c0] sm:$0xff]
    %v332 = vld [vmem:[#allocation5 + $0x3c8] sm:$0xff]
    %v333 = vld [vmem:[#allocation5 + $0x3d0] sm:$0xff]
    %v334 = vld [vmem:[#allocation5 + $0x3d8] sm:$0xff]
    %v335 = vld [vmem:[#allocation5 + $0x3e0] sm:$0xff]
    %v336 = vld [vmem:[#allocation5 + $0x3e8] sm:$0xff]
    %v337 = vld [vmem:[#allocation5 + $0x3f0] sm:$0xff]
    %v338 = vld [vmem:[#allocation5 + $0x3f8] sm:$0xff]
    %v339 = vld [vmem:[#allocation5 + $0x400] sm:$0xff]
    %v340 = vld [vmem:[#allocation5 + $0x408] sm:$0xff]
    %v341 = vld [vmem:[#allocation5 + $0x410] sm:$0xff]
    %v342 = vld [vmem:[#allocation5 + $0x418] sm:$0xff]
    %v343 = vld [vmem:[#allocation5 + $0x420] sm:$0xff]
    %v344 = vld [vmem:[#allocation5 + $0x428] sm:$0xff]
    %v345 = vld [vmem:[#allocation5 + $0x430] sm:$0xff]
    %v346 = vld [vmem:[#allocation5 + $0x438] sm:$0xff]
    %v347 = vld [vmem:[#allocation5 + $0x440] sm:$0xff]
    %v348 = vld [vmem:[#allocation5 + $0x448] sm:$0xff]
    %v349 = vld [vmem:[#allocation5 + $0x450] sm:$0xff]
    %v350 = vld [vmem:[#allocation5 + $0x458] sm:$0xff]
    %v351 = vld [vmem:[#allocation5 + $0x460] sm:$0xff]
    %v352 = vld [vmem:[#allocation5 + $0x468] sm:$0xff]
    %v353 = vld [vmem:[#allocation5 + $0x470] sm:$0xff]
    %v354 = vld [vmem:[#allocation5 + $0x478] sm:$0xff]
    %vm357 = vcmask 1041409
    %v358 = vsel %vm357, %v160, %v150
    %360 = vmatprep.subr.mxu0 %v260
    %361 = vmatpush1.msra.mxu0 %v259
    %362 = vmatprep.subr.mxu0 %v263
    %363 = vmatpush1.msra.mxu0 %v262
    %364 = vmatprep.subr.mxu0 %v266
    %365 = vmatpush1.msra.mxu0 %v265
    %366 = vmatprep.subr.mxu0 %v269
    %367 = vmatpush1.msra.mxu0 %v268
    %368 = vmatprep.subr.mxu0 %v272
    %369 = vmatpush1.msra.mxu0 %v271
    %370 = vmatprep.subr.mxu0 %v275
    %371 = vmatpush1.msra.mxu0 %v274
    %372 = vmatprep.subr.mxu0 %v278
    %373 = vmatpush1.msra.mxu0 %v277
    %374 = vmatprep.subr.mxu0 %v281
    %375 = vmatpush1.msra.mxu0 %v280
    %376 = vmatprep.subr.mxu0 %v284
    %377 = vmatpush1.msra.mxu0 %v283
    %378 = vmatprep.subr.mxu0 %v287
    %379 = vmatpush1.msra.mxu0 %v286
    %380 = vmatprep.subr.mxu0 %v290
    %381 = vmatpush1.msra.mxu0 %v289
    %382 = vmatprep.subr.mxu0 %v293
    %383 = vmatpush1.msra.mxu0 %v292
    %384 = vmatprep.subr.mxu0 %v296
    %385 = vmatpush1.msra.mxu0 %v295
    %386 = vmatprep.subr.mxu0 %v299
    %387 = vmatpush1.msra.mxu0 %v298
    %388 = vmatprep.subr.mxu0 %v302
    %389 = vmatpush1.msra.mxu0 %v301
    %390 = vmatprep.subr.mxu0 %v305
    %391 = vmatpush1.msra.mxu0 %v304
    %392 = vmatprep.subr.mxu0 0.0
    %393 = vmatpush1.msra.mxu0 0.0
    %394 = vmatprep.subr.mxu0 0.0
    %395 = vmatpush1.msra.mxu0 0.0
    %396 = vmatprep.subr.mxu0 0.0
    %397 = vmatpush1.msra.mxu0 0.0
    %398 = vmatprep.subr.mxu0 0.0
    %399 = vmatpush1.msra.mxu0 0.0
    %400 = vmatprep.subr.mxu0 0.0
    %401 = vmatpush1.msra.mxu0 0.0
    %402 = vmatprep.subr.mxu0 0.0
    %403 = vmatpush1.msra.mxu0 0.0
    %404 = vmatprep.subr.mxu0 0.0
    %405 = vmatpush1.msra.mxu0 0.0
    %406 = vmatprep.subr.mxu0 0.0
    %407 = vmatpush1.msra.mxu0 0.0
    %408 = vmatprep.subr.mxu0 0.0
    %409 = vmatpush1.msra.mxu0 0.0
    %410 = vmatprep.subr.mxu0 0.0
    %411 = vmatpush1.msra.mxu0 0.0
    %412 = vmatprep.subr.mxu0 0.0
    %413 = vmatpush1.msra.mxu0 0.0
    %414 = vmatprep.subr.mxu0 0.0
    %415 = vmatpush1.msra.mxu0 0.0
    %416 = vmatprep.subr.mxu0 0.0
    %417 = vmatpush1.msra.mxu0 0.0
    %418 = vmatprep.subr.mxu0 0.0
    %419 = vmatpush1.msra.mxu0 0.0
    %420 = vmatprep.subr.mxu0 0.0
    %421 = vmatpush1.msra.mxu0 0.0
    %422 = vmatprep.subr.mxu0 0.0
    %423 = vmatpush1.msra.mxu0 0.0
    %424 = vmatprep.mubr.f32.mxu0 0.0
    %425 = vmatmul.mubr.f32.gmra.mrb[0].mxu0 %v358
    %v426 = vpop.f32.mrb[0].mxu0
    %v427 = vadd.f32 0.0, %v426
    %v428 = vpop.f32.mrb[0].mxu0
    %v429 = vadd.f32 0.0, %v428
    %430 = vdwg.mxu0
    %431 = vmatprep.subr.mxu0 0.0
    %432 = vmatpush1.msra.mxu0 %v261
    %433 = vmatprep.subr.mxu0 0.0
    %434 = vmatpush1.msra.mxu0 %v264
    %435 = vmatprep.subr.mxu0 0.0
    %436 = vmatpush1.msra.mxu0 %v267
    %437 = vmatprep.subr.mxu0 0.0
    %438 = vmatpush1.msra.mxu0 %v270
    %439 = vmatprep.subr.mxu0 0.0
    %440 = vmatpush1.msra.mxu0 %v273
    %441 = vmatprep.subr.mxu0 0.0
    %442 = vmatpush1.msra.mxu0 %v276
    %443 = vmatprep.subr.mxu0 0.0
    %444 = vmatpush1.msra.mxu0 %v279
    %445 = vmatprep.subr.mxu0 0.0
    %446 = vmatpush1.msra.mxu0 %v282
    %447 = vmatprep.subr.mxu0 0.0
    %448 = vmatpush1.msra.mxu0 %v285
    %449 = vmatprep.subr.mxu0 0.0
    %450 = vmatpush1.msra.mxu0 %v288
    %451 = vmatprep.subr.mxu0 0.0
    %452 = vmatpush1.msra.mxu0 %v291
    %453 = vmatprep.subr.mxu0 0.0
    %454 = vmatpush1.msra.mxu0 %v294
    %455 = vmatprep.subr.mxu0 0.0
    %456 = vmatpush1.msra.mxu0 %v297
    %457 = vmatprep.subr.mxu0 0.0
    %458 = vmatpush1.msra.mxu0 %v300
    %459 = vmatprep.subr.mxu0 0.0
    %460 = vmatpush1.msra.mxu0 %v303
    %461 = vmatprep.subr.mxu0 0.0
    %462 = vmatpush1.msra.mxu0 %v306
    %463 = vmatprep.subr.mxu0 0.0
    %464 = vmatpush1.msra.mxu0 0.0
    %465 = vmatprep.subr.mxu0 0.0
    %466 = vmatpush1.msra.mxu0 0.0
    %467 = vmatprep.subr.mxu0 0.0
    %468 = vmatpush1.msra.mxu0 0.0
    %469 = vmatprep.subr.mxu0 0.0
    %470 = vmatpush1.msra.mxu0 0.0
    %471 = vmatprep.subr.mxu0 0.0
    %472 = vmatpush1.msra.mxu0 0.0
    %473 = vmatprep.subr.mxu0 0.0
    %474 = vmatpush1.msra.mxu0 0.0
    %475 = vmatprep.subr.mxu0 0.0
    %476 = vmatpush1.msra.mxu0 0.0
    %477 = vmatprep.subr.mxu0 0.0
    %478 = vmatpush1.msra.mxu0 0.0
    %479 = vmatprep.subr.mxu0 0.0
    %480 = vmatpush1.msra.mxu0 0.0
    %481 = vmatprep.subr.mxu0 0.0
    %482 = vmatpush1.msra.mxu0 0.0
    %483 = vmatprep.subr.mxu0 0.0
    %484 = vmatpush1.msra.mxu0 0.0
    %485 = vmatprep.subr.mxu0 0.0
    %486 = vmatpush1.msra.mxu0 0.0
    %487 = vmatprep.subr.mxu0 0.0
    %488 = vmatpush1.msra.mxu0 0.0
    %489 = vmatprep.subr.mxu0 0.0
    %490 = vmatpush1.msra.mxu0 0.0
    %491 = vmatprep.subr.mxu0 0.0
    %492 = vmatpush1.msra.mxu0 0.0
    %493 = vmatprep.subr.mxu0 0.0
    %494 = vmatpush1.msra.mxu0 0.0
    %495 = vmatprep.mubr.f32.mxu0 0.0
    %496 = vmatmul.mubr.f32.gmra.mrb[0].mxu0 %v358
    %v497 = vpop.f32.mrb[0].mxu0
    %v498 = vadd.f32 0.0, %v497
    %v499 = vpop.f32.mrb[0].mxu0
    %500 = vdwg.mxu0
    %v501 = vrot.slane %v106, 7
    %v502 = vsel %vm357, %v501, %v98
    %504 = vmatprep.subr.mxu0 %v212
    %505 = vmatpush1.msra.mxu0 %v211
    %506 = vmatprep.subr.mxu0 %v215
    %507 = vmatpush1.msra.mxu0 %v214
    %508 = vmatprep.subr.mxu0 %v218
    %509 = vmatpush1.msra.mxu0 %v217
    %510 = vmatprep.subr.mxu0 %v221
    %511 = vmatpush1.msra.mxu0 %v220
    %512 = vmatprep.subr.mxu0 %v224
    %513 = vmatpush1.msra.mxu0 %v223
    %514 = vmatprep.subr.mxu0 %v227
    %515 = vmatpush1.msra.mxu0 %v226
    %516 = vmatprep.subr.mxu0 %v230
    %517 = vmatpush1.msra.mxu0 %v229
    %518 = vmatprep.subr.mxu0 %v233
    %519 = vmatpush1.msra.mxu0 %v232
    %520 = vmatprep.subr.mxu0 %v236
    %521 = vmatpush1.msra.mxu0 %v235
    %522 = vmatprep.subr.mxu0 %v239
    %523 = vmatpush1.msra.mxu0 %v238
    %524 = vmatprep.subr.mxu0 %v242
    %525 = vmatpush1.msra.mxu0 %v241
    %526 = vmatprep.subr.mxu0 %v245
    %527 = vmatpush1.msra.mxu0 %v244
    %528 = vmatprep.subr.mxu0 %v248
    %529 = vmatpush1.msra.mxu0 %v247
    %530 = vmatprep.subr.mxu0 %v251
    %531 = vmatpush1.msra.mxu0 %v250
    %532 = vmatprep.subr.mxu0 %v254
    %533 = vmatpush1.msra.mxu0 %v253
    %534 = vmatprep.subr.mxu0 %v257
    %535 = vmatpush1.msra.mxu0 %v256
    %536 = vmatprep.subr.mxu0 0.0
    %537 = vmatpush1.msra.mxu0 0.0
    %538 = vmatprep.subr.mxu0 0.0
    %539 = vmatpush1.msra.mxu0 0.0
    %540 = vmatprep.subr.mxu0 0.0
    %541 = vmatpush1.msra.mxu0 0.0
    %542 = vmatprep.subr.mxu0 0.0
    %543 = vmatpush1.msra.mxu0 0.0
    %544 = vmatprep.subr.mxu0 0.0
    %545 = vmatpush1.msra.mxu0 0.0
    %546 = vmatprep.subr.mxu0 0.0
    %547 = vmatpush1.msra.mxu0 0.0
    %548 = vmatprep.subr.mxu0 0.0
    %549 = vmatpush1.msra.mxu0 0.0
    %550 = vmatprep.subr.mxu0 0.0
    %551 = vmatpush1.msra.mxu0 0.0
    %552 = vmatprep.subr.mxu0 0.0
    %553 = vmatpush1.msra.mxu0 0.0
    %554 = vmatprep.subr.mxu0 0.0
    %555 = vmatpush1.msra.mxu0 0.0
    %556 = vmatprep.subr.mxu0 0.0
    %557 = vmatpush1.msra.mxu0 0.0
    %558 = vmatprep.subr.mxu0 0.0
    %559 = vmatpush1.msra.mxu0 0.0
    %560 = vmatprep.subr.mxu0 0.0
    %561 = vmatpush1.msra.mxu0 0.0
    %562 = vmatprep.subr.mxu0 0.0
    %563 = vmatpush1.msra.mxu0 0.0
    %564 = vmatprep.subr.mxu0 0.0
    %565 = vmatpush1.msra.mxu0 0.0
    %566 = vmatprep.subr.mxu0 0.0
    %567 = vmatpush1.msra.mxu0 0.0
    %568 = vmatprep.mubr.f32.mxu0 0.0
    %569 = vmatmul.mubr.f32.gmra.mrb[0].mxu0 %v502
    %v570 = vpop.f32.mrb[0].mxu0
    %v571 = vadd.f32 %v427, %v570
    %v572 = vpop.f32.mrb[0].mxu0
    %v573 = vadd.f32 %v429, %v572
    %574 = vdwg.mxu0
    %575 = vmatprep.subr.mxu0 0.0
    %576 = vmatpush1.msra.mxu0 %v213
    %577 = vmatprep.subr.mxu0 0.0
    %578 = vmatpush1.msra.mxu0 %v216
    %579 = vmatprep.subr.mxu0 0.0
    %580 = vmatpush1.msra.mxu0 %v219
    %581 = vmatprep.subr.mxu0 0.0
    %582 = vmatpush1.msra.mxu0 %v222
    %583 = vmatprep.subr.mxu0 0.0
    %584 = vmatpush1.msra.mxu0 %v225
    %585 = vmatprep.subr.mxu0 0.0
    %586 = vmatpush1.msra.mxu0 %v228
    %587 = vmatprep.subr.mxu0 0.0
    %588 = vmatpush1.msra.mxu0 %v231
    %589 = vmatprep.subr.mxu0 0.0
    %590 = vmatpush1.msra.mxu0 %v234
    %591 = vmatprep.subr.mxu0 0.0
    %592 = vmatpush1.msra.mxu0 %v237
    %593 = vmatprep.subr.mxu0 0.0
    %594 = vmatpush1.msra.mxu0 %v240
    %595 = vmatprep.subr.mxu0 0.0
    %596 = vmatpush1.msra.mxu0 %v243
    %597 = vmatprep.subr.mxu0 0.0
    %598 = vmatpush1.msra.mxu0 %v246
    %599 = vmatprep.subr.mxu0 0.0
    %600 = vmatpush1.msra.mxu0 %v249
    %601 = vmatprep.subr.mxu0 0.0
    %602 = vmatpush1.msra.mxu0 %v252
    %603 = vmatprep.subr.mxu0 0.0
    %604 = vmatpush1.msra.mxu0 %v255
    %605 = vmatprep.subr.mxu0 0.0
    %606 = vmatpush1.msra.mxu0 %v258
    %607 = vmatprep.subr.mxu0 0.0
    %608 = vmatpush1.msra.mxu0 0.0
    %609 = vmatprep.subr.mxu0 0.0
    %610 = vmatpush1.msra.mxu0 0.0
    %611 = vmatprep.subr.mxu0 0.0
    %612 = vmatpush1.msra.mxu0 0.0
    %613 = vmatprep.subr.mxu0 0.0
    %614 = vmatpush1.msra.mxu0 0.0
    %615 = vmatprep.subr.mxu0 0.0
    %616 = vmatpush1.msra.mxu0 0.0
    %617 = vmatprep.subr.mxu0 0.0
    %618 = vmatpush1.msra.mxu0 0.0
    %619 = vmatprep.subr.mxu0 0.0
    %620 = vmatpush1.msra.mxu0 0.0
    %621 = vmatprep.subr.mxu0 0.0
    %622 = vmatpush1.msra.mxu0 0.0
    %623 = vmatprep.subr.mxu0 0.0
    %624 = vmatpush1.msra.mxu0 0.0
    %625 = vmatprep.subr.mxu0 0.0
    %626 = vmatpush1.msra.mxu0 0.0
    %627 = vmatprep.subr.mxu0 0.0
    %628 = vmatpush1.msra.mxu0 0.0
    %629 = vmatprep.subr.mxu0 0.0
    %630 = vmatpush1.msra.mxu0 0.0
    %631 = vmatprep.subr.mxu0 0.0
    %632 = vmatpush1.msra.mxu0 0.0
    %633 = vmatprep.subr.mxu0 0.0
    %634 = vmatpush1.msra.mxu0 0.0
    %635 = vmatprep.subr.mxu0 0.0
    %636 = vmatpush1.msra.mxu0 0.0
    %637 = vmatprep.subr.mxu0 0.0
    %638 = vmatpush1.msra.mxu0 0.0
    %639 = vmatprep.mubr.f32.mxu0 0.0
    %640 = vmatmul.mubr.f32.gmra.mrb[0].mxu0 %v502
    %v641 = vpop.f32.mrb[0].mxu0
    %v642 = vadd.f32 %v498, %v641
    %v643 = vpop.f32.mrb[0].mxu0
    %644 = vdwg.mxu0
    %v647 = vsel %vm357, %v210, %v200
    %649 = vmatprep.subr.mxu0 %v308
    %650 = vmatpush1.msra.mxu0 %v307
    %651 = vmatprep.subr.mxu0 %v311
    %652 = vmatpush1.msra.mxu0 %v310
    %653 = vmatprep.subr.mxu0 %v314
    %654 = vmatpush1.msra.mxu0 %v313
    %655 = vmatprep.subr.mxu0 %v317
    %656 = vmatpush1.msra.mxu0 %v316
    %657 = vmatprep.subr.mxu0 %v320
    %658 = vmatpush1.msra.mxu0 %v319
    %659 = vmatprep.subr.mxu0 %v323
    %660 = vmatpush1.msra.mxu0 %v322
    %661 = vmatprep.subr.mxu0 %v326
    %662 = vmatpush1.msra.mxu0 %v325
    %663 = vmatprep.subr.mxu0 %v329
    %664 = vmatpush1.msra.mxu0 %v328
    %665 = vmatprep.subr.mxu0 %v332
    %666 = vmatpush1.msra.mxu0 %v331
    %667 = vmatprep.subr.mxu0 %v335
    %668 = vmatpush1.msra.mxu0 %v334
    %669 = vmatprep.subr.mxu0 %v338
    %670 = vmatpush1.msra.mxu0 %v337
    %671 = vmatprep.subr.mxu0 %v341
    %672 = vmatpush1.msra.mxu0 %v340
    %673 = vmatprep.subr.mxu0 %v344
    %674 = vmatpush1.msra.mxu0 %v343
    %675 = vmatprep.subr.mxu0 %v347
    %676 = vmatpush1.msra.mxu0 %v346
    %677 = vmatprep.subr.mxu0 %v350
    %678 = vmatpush1.msra.mxu0 %v349
    %679 = vmatprep.subr.mxu0 %v353
    %680 = vmatpush1.msra.mxu0 %v352
    %681 = vmatprep.subr.mxu0 0.0
    %682 = vmatpush1.msra.mxu0 0.0
    %683 = vmatprep.subr.mxu0 0.0
    %684 = vmatpush1.msra.mxu0 0.0
    %685 = vmatprep.subr.mxu0 0.0
    %686 = vmatpush1.msra.mxu0 0.0
    %687 = vmatprep.subr.mxu0 0.0
    %688 = vmatpush1.msra.mxu0 0.0
    %689 = vmatprep.subr.mxu0 0.0
    %690 = vmatpush1.msra.mxu0 0.0
    %691 = vmatprep.subr.mxu0 0.0
    %692 = vmatpush1.msra.mxu0 0.0
    %693 = vmatprep.subr.mxu0 0.0
    %694 = vmatpush1.msra.mxu0 0.0
    %695 = vmatprep.subr.mxu0 0.0
    %696 = vmatpush1.msra.mxu0 0.0
    %697 = vmatprep.subr.mxu0 0.0
    %698 = vmatpush1.msra.mxu0 0.0
    %699 = vmatprep.subr.mxu0 0.0
    %700 = vmatpush1.msra.mxu0 0.0
    %701 = vmatprep.subr.mxu0 0.0
    %702 = vmatpush1.msra.mxu0 0.0
    %703 = vmatprep.subr.mxu0 0.0
    %704 = vmatpush1.msra.mxu0 0.0
    %705 = vmatprep.subr.mxu0 0.0
    %706 = vmatpush1.msra.mxu0 0.0
    %707 = vmatprep.subr.mxu0 0.0
    %708 = vmatpush1.msra.mxu0 0.0
    %709 = vmatprep.subr.mxu0 0.0
    %710 = vmatpush1.msra.mxu0 0.0
    %711 = vmatprep.subr.mxu0 0.0
    %712 = vmatpush1.msra.mxu0 0.0
    %713 = vmatprep.mubr.f32.mxu0 0.0
    %714 = vmatmul.mubr.f32.gmra.mrb[0].mxu0 %v647
    %v715 = vpop.f32.mrb[0].mxu0
    %v716 = vadd.f32 0.0, %v715
    %v717 = vpop.f32.mrb[0].mxu0
    %v718 = vadd.f32 0.0, %v717
    %719 = vdwg.mxu0
    %720 = vmatprep.subr.mxu0 0.0
    %721 = vmatpush1.msra.mxu0 %v309
    %722 = vmatprep.subr.mxu0 0.0
    %723 = vmatpush1.msra.mxu0 %v312
    %724 = vmatprep.subr.mxu0 0.0
    %725 = vmatpush1.msra.mxu0 %v315
    %726 = vmatprep.subr.mxu0 0.0
    %727 = vmatpush1.msra.mxu0 %v318
    %728 = vmatprep.subr.mxu0 0.0
    %729 = vmatpush1.msra.mxu0 %v321
    %730 = vmatprep.subr.mxu0 0.0
    %731 = vmatpush1.msra.mxu0 %v324
    %732 = vmatprep.subr.mxu0 0.0
    %733 = vmatpush1.msra.mxu0 %v327
    %734 = vmatprep.subr.mxu0 0.0
    %735 = vmatpush1.msra.mxu0 %v330
    %736 = vmatprep.subr.mxu0 0.0
    %737 = vmatpush1.msra.mxu0 %v333
    %738 = vmatprep.subr.mxu0 0.0
    %739 = vmatpush1.msra.mxu0 %v336
    %740 = vmatprep.subr.mxu0 0.0
    %741 = vmatpush1.msra.mxu0 %v339
    %742 = vmatprep.subr.mxu0 0.0
    %743 = vmatpush1.msra.mxu0 %v342
    %744 = vmatprep.subr.mxu0 0.0
    %745 = vmatpush1.msra.mxu0 %v345
    %746 = vmatprep.subr.mxu0 0.0
    %747 = vmatpush1.msra.mxu0 %v348
    %748 = vmatprep.subr.mxu0 0.0
    %749 = vmatpush1.msra.mxu0 %v351
    %750 = vmatprep.subr.mxu0 0.0
    %751 = vmatpush1.msra.mxu0 %v354
    %752 = vmatprep.subr.mxu0 0.0
    %753 = vmatpush1.msra.mxu0 0.0
    %754 = vmatprep.subr.mxu0 0.0
    %755 = vmatpush1.msra.mxu0 0.0
    %756 = vmatprep.subr.mxu0 0.0
    %757 = vmatpush1.msra.mxu0 0.0
    %758 = vmatprep.subr.mxu0 0.0
    %759 = vmatpush1.msra.mxu0 0.0
    %760 = vmatprep.subr.mxu0 0.0
    %761 = vmatpush1.msra.mxu0 0.0
    %762 = vmatprep.subr.mxu0 0.0
    %763 = vmatpush1.msra.mxu0 0.0
    %764 = vmatprep.subr.mxu0 0.0
    %765 = vmatpush1.msra.mxu0 0.0
    %766 = vmatprep.subr.mxu0 0.0
    %767 = vmatpush1.msra.mxu0 0.0
    %768 = vmatprep.subr.mxu0 0.0
    %769 = vmatpush1.msra.mxu0 0.0
    %770 = vmatprep.subr.mxu0 0.0
    %771 = vmatpush1.msra.mxu0 0.0
    %772 = vmatprep.subr.mxu0 0.0
    %773 = vmatpush1.msra.mxu0 0.0
    %774 = vmatprep.subr.mxu0 0.0
    %775 = vmatpush1.msra.mxu0 0.0
    %776 = vmatprep.subr.mxu0 0.0
    %777 = vmatpush1.msra.mxu0 0.0
    %778 = vmatprep.subr.mxu0 0.0
    %779 = vmatpush1.msra.mxu0 0.0
    %780 = vmatprep.subr.mxu0 0.0
    %781 = vmatpush1.msra.mxu0 0.0
    %782 = vmatprep.subr.mxu0 0.0
    %783 = vmatpush1.msra.mxu0 0.0
    %784 = vmatprep.mubr.f32.mxu0 0.0
    %785 = vmatmul.mubr.f32.gmra.mrb[0].mxu0 %v647
    %v786 = vpop.f32.mrb[0].mxu0
    %v787 = vadd.f32 0.0, %v786
    %v788 = vpop.f32.mrb[0].mxu0
    %789 = vdwg.mxu0
    %v790 = vadd.f32 %v571, %v716
    %v791 = vadd.f32 %v573, %v718
    %v792 = vadd.f32 %v642, %v787
    %v793 = vld [vmem:[%s4] sm:$0x7]
    %v795 = vlaneseq
    %v796 = vshrl.u32 %v795, 7
    %v797 = vsub.s32 0, %v796
    %v798 = vrot.slane %v793, %v797
    %v799 = vlaneseq
    %v800 = vshrl.u32 %v799, 7
    %v801 = vsub.s32 1, %v800
    %v802 = vrot.slane %v793, %v801
    %v803 = vlaneseq
    %v804 = vshrl.u32 %v803, 7
    %v805 = vsub.s32 2, %v804
    %v806 = vrot.slane %v793, %v805
    %v810 = vadd.f32 %v790, %v798
    %v811 = vadd.f32 %v791, %v802
    %v812 = vadd.f32 %v792, %v806
    %v813 = vmul.f32 %v810, 0.5
    %v814 = vmul.f32 %v813, 1.442695
    %v815 = vpow.pop %v814
    %v816 = vld [vmem:[%s1] sm:$0x3]
    %818 = vrot.lane.b32.xlu0 %v816, 64
    %v819 = vpop.permute.xlu0 %818
    %v821 = vmul.f32 %v815, %v819
    %823 = vrot.lane.b32.xlu0 %v821, 64
    %v824 = vpop.permute.xlu0 %823
    %v826 = vadd.f32 %v810, %v824
    %v827 = vld [vmem:[%s2] sm:$0x3]
    %v828 = vmul.f32 %v812, %v827
    %v829 = vld [vmem:[#allocation7] sm:$0xff]
    %v830 = vld [vmem:[#allocation7 + $0x8] sm:$0xff]
    %v831 = vld [vmem:[#allocation7 + $0x10] sm:$0xff]
    %v832 = vld [vmem:[#allocation7 + $0x18] sm:$0xff]
    %v833 = vld [vmem:[#allocation7 + $0x20] sm:$0xff]
    %v834 = vld [vmem:[#allocation7 + $0x28] sm:$0xff]
    %v835 = vld [vmem:[#allocation7 + $0x30] sm:$0xff]
    %v836 = vld [vmem:[#allocation7 + $0x38] sm:$0xff]
    %v837 = vld [vmem:[#allocation7 + $0x40] sm:$0xff]
    %v838 = vld [vmem:[#allocation7 + $0x48] sm:$0xff]
    %v839 = vld [vmem:[#allocation7 + $0x50] sm:$0xff]
    %v840 = vld [vmem:[#allocation7 + $0x58] sm:$0xff]
    %v841 = vld [vmem:[#allocation7 + $0x60] sm:$0xff]
    %v842 = vld [vmem:[#allocation7 + $0x68] sm:$0xff]
    %v843 = vld [vmem:[#allocation7 + $0x70] sm:$0xff]
    %v844 = vld [vmem:[#allocation7 + $0x78] sm:$0xff]
    %v845 = vld [vmem:[#allocation7 + $0x80] sm:$0xff]
    %v846 = vld [vmem:[#allocation7 + $0x88] sm:$0xff]
    %v847 = vld [vmem:[#allocation7 + $0x90] sm:$0xff]
    %v848 = vld [vmem:[#allocation7 + $0x98] sm:$0xff]
    %v849 = vld [vmem:[#allocation7 + $0xa0] sm:$0xff]
    %v850 = vld [vmem:[#allocation7 + $0xa8] sm:$0xff]
    %v851 = vld [vmem:[#allocation7 + $0xb0] sm:$0xff]
    %v852 = vld [vmem:[#allocation7 + $0xb8] sm:$0xff]
    %v853 = vld [vmem:[#allocation7 + $0xc0] sm:$0xff]
    %v854 = vld [vmem:[#allocation7 + $0xc8] sm:$0xff]
    %v855 = vld [vmem:[#allocation7 + $0xd0] sm:$0xff]
    %v856 = vld [vmem:[#allocation7 + $0xd8] sm:$0xff]
    %v857 = vld [vmem:[#allocation7 + $0xe0] sm:$0xff]
    %v858 = vld [vmem:[#allocation7 + $0xe8] sm:$0xff]
    %v859 = vld [vmem:[#allocation7 + $0xf0] sm:$0xff]
    %v860 = vld [vmem:[#allocation7 + $0xf8] sm:$0xff]
    %v861 = vld [vmem:[#allocation7 + $0x100] sm:$0xff]
    %v862 = vld [vmem:[#allocation7 + $0x108] sm:$0xff]
    %v863 = vld [vmem:[#allocation7 + $0x110] sm:$0xff]
    %v864 = vld [vmem:[#allocation7 + $0x118] sm:$0xff]
    %v865 = vld [vmem:[#allocation7 + $0x120] sm:$0xff]
    %v866 = vld [vmem:[#allocation7 + $0x128] sm:$0xff]
    %v867 = vld [vmem:[#allocation7 + $0x130] sm:$0xff]
    %v868 = vld [vmem:[#allocation7 + $0x138] sm:$0xff]
    %v869 = vld [vmem:[#allocation7 + $0x140] sm:$0xff]
    %v870 = vld [vmem:[#allocation7 + $0x148] sm:$0xff]
    %v871 = vld [vmem:[#allocation7 + $0x150] sm:$0xff]
    %v872 = vld [vmem:[#allocation7 + $0x158] sm:$0xff]
    %v873 = vld [vmem:[#allocation7 + $0x160] sm:$0xff]
    %v874 = vld [vmem:[#allocation7 + $0x168] sm:$0xff]
    %v875 = vld [vmem:[#allocation7 + $0x170] sm:$0xff]
    %v876 = vld [vmem:[#allocation7 + $0x178] sm:$0xff]
    %v877 = vld [vmem:[#allocation7 + $0x180] sm:$0xff]
    %v878 = vld [vmem:[#allocation7 + $0x188] sm:$0xff]
    %v879 = vld [vmem:[#allocation7 + $0x190] sm:$0xff]
    %v880 = vld [vmem:[#allocation7 + $0x198] sm:$0xff]
    %v881 = vld [vmem:[#allocation7 + $0x1a0] sm:$0xff]
    %v882 = vld [vmem:[#allocation7 + $0x1a8] sm:$0xff]
    %v883 = vld [vmem:[#allocation7 + $0x1b0] sm:$0xff]
    %v884 = vld [vmem:[#allocation7 + $0x1b8] sm:$0xff]
    %v885 = vld [vmem:[#allocation7 + $0x1c0] sm:$0xff]
    %v886 = vld [vmem:[#allocation7 + $0x1c8] sm:$0xff]
    %v887 = vld [vmem:[#allocation7 + $0x1d0] sm:$0xff]
    %v888 = vld [vmem:[#allocation7 + $0x1d8] sm:$0xff]
    %v889 = vld [vmem:[#allocation7 + $0x1e0] sm:$0xff]
    %v890 = vld [vmem:[#allocation7 + $0x1e8] sm:$0xff]
    %v891 = vld [vmem:[#allocation7 + $0x1f0] sm:$0xff]
    %v892 = vld [vmem:[#allocation7 + $0x1f8] sm:$0xff]
    %v893 = vld [vmem:[#allocation7 + $0x200] sm:$0xff]
    %v894 = vld [vmem:[#allocation7 + $0x208] sm:$0xff]
    %v895 = vld [vmem:[#allocation7 + $0x210] sm:$0xff]
    %v896 = vld [vmem:[#allocation7 + $0x218] sm:$0xff]
    %v897 = vld [vmem:[#allocation7 + $0x220] sm:$0xff]
    %v898 = vld [vmem:[#allocation7 + $0x228] sm:$0xff]
    %v899 = vld [vmem:[#allocation7 + $0x230] sm:$0xff]
    %v900 = vld [vmem:[#allocation7 + $0x238] sm:$0xff]
    %v901 = vld [vmem:[#allocation7 + $0x240] sm:$0xff]
    %v902 = vld [vmem:[#allocation7 + $0x248] sm:$0xff]
    %v903 = vld [vmem:[#allocation7 + $0x250] sm:$0xff]
    %v904 = vld [vmem:[#allocation7 + $0x258] sm:$0xff]
    %v905 = vld [vmem:[#allocation7 + $0x260] sm:$0xff]
    %v906 = vld [vmem:[#allocation7 + $0x268] sm:$0xff]
    %v907 = vld [vmem:[#allocation7 + $0x270] sm:$0xff]
    %v908 = vld [vmem:[#allocation7 + $0x278] sm:$0xff]
    %vm909 = vcmask 523264
    %v911 = vsel %vm909, %v811, 0
    %913 = vmatprep.subr.mxu0 %v846
    %914 = vmatpush1.msra.mxu0 %v845
    %915 = vmatprep.subr.mxu0 %v848
    %916 = vmatpush1.msra.mxu0 %v847
    %917 = vmatprep.subr.mxu0 %v850
    %918 = vmatpush1.msra.mxu0 %v849
    %919 = vmatprep.subr.mxu0 %v852
    %920 = vmatpush1.msra.mxu0 %v851
    %921 = vmatprep.subr.mxu0 %v854
    %922 = vmatpush1.msra.mxu0 %v853
    %923 = vmatprep.subr.mxu0 %v856
    %924 = vmatpush1.msra.mxu0 %v855
    %925 = vmatprep.subr.mxu0 %v858
    %926 = vmatpush1.msra.mxu0 %v857
    %927 = vmatprep.subr.mxu0 %v860
    %928 = vmatpush1.msra.mxu0 %v859
    %929 = vmatprep.subr.mxu0 0.0
    %930 = vmatpush1.msra.mxu0 0.0
    %931 = vmatprep.subr.mxu0 0.0
    %932 = vmatpush1.msra.mxu0 0.0
    %933 = vmatprep.subr.mxu0 0.0
    %934 = vmatpush1.msra.mxu0 0.0
    %935 = vmatprep.subr.mxu0 0.0
    %936 = vmatpush1.msra.mxu0 0.0
    %937 = vmatprep.subr.mxu0 0.0
    %938 = vmatpush1.msra.mxu0 0.0
    %939 = vmatprep.subr.mxu0 0.0
    %940 = vmatpush1.msra.mxu0 0.0
    %941 = vmatprep.subr.mxu0 0.0
    %942 = vmatpush1.msra.mxu0 0.0
    %943 = vmatprep.subr.mxu0 0.0
    %944 = vmatpush1.msra.mxu0 0.0
    %945 = vmatprep.subr.mxu0 0.0
    %946 = vmatpush1.msra.mxu0 0.0
    %947 = vmatprep.subr.mxu0 0.0
    %948 = vmatpush1.msra.mxu0 0.0
    %949 = vmatprep.subr.mxu0 0.0
    %950 = vmatpush1.msra.mxu0 0.0
    %951 = vmatprep.subr.mxu0 0.0
    %952 = vmatpush1.msra.mxu0 0.0
    %953 = vmatprep.subr.mxu0 0.0
    %954 = vmatpush1.msra.mxu0 0.0
    %955 = vmatprep.subr.mxu0 0.0
    %956 = vmatpush1.msra.mxu0 0.0
    %957 = vmatprep.subr.mxu0 0.0
    %958 = vmatpush1.msra.mxu0 0.0
    %959 = vmatprep.subr.mxu0 0.0
    %960 = vmatpush1.msra.mxu0 0.0
    %961 = vmatprep.subr.mxu0 0.0
    %962 = vmatpush1.msra.mxu0 0.0
    %963 = vmatprep.subr.mxu0 0.0
    %964 = vmatpush1.msra.mxu0 0.0
    %965 = vmatprep.subr.mxu0 0.0
    %966 = vmatpush1.msra.mxu0 0.0
    %967 = vmatprep.subr.mxu0 0.0
    %968 = vmatpush1.msra.mxu0 0.0
    %969 = vmatprep.subr.mxu0 0.0
    %970 = vmatpush1.msra.mxu0 0.0
    %971 = vmatprep.subr.mxu0 0.0
    %972 = vmatpush1.msra.mxu0 0.0
    %973 = vmatprep.subr.mxu0 0.0
    %974 = vmatpush1.msra.mxu0 0.0
    %975 = vmatprep.subr.mxu0 0.0
    %976 = vmatpush1.msra.mxu0 0.0
    %977 = vmatprep.mubr.f32.mxu0 0.0
    %978 = vmatmul.mubr.f32.gmra.mrb[0].mxu0 %v911
    %v979 = vpop.f32.mrb[0].mxu0
    %v980 = vadd.f32 0.0, %v979
    %v981 = vpop.f32.mrb[0].mxu0
    %v982 = vadd.f32 0.0, %v981
    %983 = vdwg.mxu0
    %v985 = vsel %vm909, %v826, 0
    %987 = vmatprep.subr.mxu0 %v830
    %988 = vmatpush1.msra.mxu0 %v829
    %989 = vmatprep.subr.mxu0 %v832
    %990 = vmatpush1.msra.mxu0 %v831
    %991 = vmatprep.subr.mxu0 %v834
    %992 = vmatpush1.msra.mxu0 %v833
    %993 = vmatprep.subr.mxu0 %v836
    %994 = vmatpush1.msra.mxu0 %v835
    %995 = vmatprep.subr.mxu0 %v838
    %996 = vmatpush1.msra.mxu0 %v837
    %997 = vmatprep.subr.mxu0 %v840
    %998 = vmatpush1.msra.mxu0 %v839
    %999 = vmatprep.subr.mxu0 %v842
    %1000 = vmatpush1.msra.mxu0 %v841
    %1001 = vmatprep.subr.mxu0 %v844
    %1002 = vmatpush1.msra.mxu0 %v843
    %1003 = vmatprep.subr.mxu0 0.0
    %1004 = vmatpush1.msra.mxu0 0.0
    %1005 = vmatprep.subr.mxu0 0.0
    %1006 = vmatpush1.msra.mxu0 0.0
    %1007 = vmatprep.subr.mxu0 0.0
    %1008 = vmatpush1.msra.mxu0 0.0
    %1009 = vmatprep.subr.mxu0 0.0
    %1010 = vmatpush1.msra.mxu0 0.0
    %1011 = vmatprep.subr.mxu0 0.0
    %1012 = vmatpush1.msra.mxu0 0.0
    %1013 = vmatprep.subr.mxu0 0.0
    %1014 = vmatpush1.msra.mxu0 0.0
    %1015 = vmatprep.subr.mxu0 0.0
    %1016 = vmatpush1.msra.mxu0 0.0
    %1017 = vmatprep.subr.mxu0 0.0
    %1018 = vmatpush1.msra.mxu0 0.0
    %1019 = vmatprep.subr.mxu0 0.0
    %1020 = vmatpush1.msra.mxu0 0.0
    %1021 = vmatprep.subr.mxu0 0.0
    %1022 = vmatpush1.msra.mxu0 0.0
    %1023 = vmatprep.subr.mxu0 0.0
    %1024 = vmatpush1.msra.mxu0 0.0
    %1025 = vmatprep.subr.mxu0 0.0
    %1026 = vmatpush1.msra.mxu0 0.0
    %1027 = vmatprep.subr.mxu0 0.0
    %1028 = vmatpush1.msra.mxu0 0.0
    %1029 = vmatprep.subr.mxu0 0.0
    %1030 = vmatpush1.msra.mxu0 0.0
    %1031 = vmatprep.subr.mxu0 0.0
    %1032 = vmatpush1.msra.mxu0 0.0
    %1033 = vmatprep.subr.mxu0 0.0
    %1034 = vmatpush1.msra.mxu0 0.0
    %1035 = vmatprep.subr.mxu0 0.0
    %1036 = vmatpush1.msra.mxu0 0.0
    %1037 = vmatprep.subr.mxu0 0.0
    %1038 = vmatpush1.msra.mxu0 0.0
    %1039 = vmatprep.subr.mxu0 0.0
    %1040 = vmatpush1.msra.mxu0 0.0
    %1041 = vmatprep.subr.mxu0 0.0
    %1042 = vmatpush1.msra.mxu0 0.0
    %1043 = vmatprep.subr.mxu0 0.0
    %1044 = vmatpush1.msra.mxu0 0.0
    %1045 = vmatprep.subr.mxu0 0.0
    %1046 = vmatpush1.msra.mxu0 0.0
    %1047 = vmatprep.subr.mxu0 0.0
    %1048 = vmatpush1.msra.mxu0 0.0
    %1049 = vmatprep.subr.mxu0 0.0
    %1050 = vmatpush1.msra.mxu0 0.0
    %1051 = vmatprep.mubr.f32.mxu0 0.0
    %1052 = vmatmul.mubr.f32.gmra.mrb[0].mxu0 %v985
    %v1053 = vpop.f32.mrb[0].mxu0
    %v1054 = vadd.f32 %v980, %v1053
    %v1055 = vpop.f32.mrb[0].mxu0
    %v1056 = vadd.f32 %v982, %v1055
    %1057 = vdwg.mxu0
    %1058 = vrot.lane.b32.xlu0 %v811, 64
    %v1059 = vpop.permute.xlu0 %1058
    %v1060 = vsel %vm909, %v1059, 0
    %1062 = vmatprep.subr.mxu0 %v862
    %1063 = vmatpush1.msra.mxu0 %v861
    %1064 = vmatprep.subr.mxu0 %v864
    %1065 = vmatpush1.msra.mxu0 %v863
    %1066 = vmatprep.subr.mxu0 %v866
    %1067 = vmatpush1.msra.mxu0 %v865
    %1068 = vmatprep.subr.mxu0 %v868
    %1069 = vmatpush1.msra.mxu0 %v867
    %1070 = vmatprep.subr.mxu0 %v870
    %1071 = vmatpush1.msra.mxu0 %v869
    %1072 = vmatprep.subr.mxu0 %v872
    %1073 = vmatpush1.msra.mxu0 %v871
    %1074 = vmatprep.subr.mxu0 %v874
    %1075 = vmatpush1.msra.mxu0 %v873
    %1076 = vmatprep.subr.mxu0 %v876
    %1077 = vmatpush1.msra.mxu0 %v875
    %1078 = vmatprep.subr.mxu0 0.0
    %1079 = vmatpush1.msra.mxu0 0.0
    %1080 = vmatprep.subr.mxu0 0.0
    %1081 = vmatpush1.msra.mxu0 0.0
    %1082 = vmatprep.subr.mxu0 0.0
    %1083 = vmatpush1.msra.mxu0 0.0
    %1084 = vmatprep.subr.mxu0 0.0
    %1085 = vmatpush1.msra.mxu0 0.0
    %1086 = vmatprep.subr.mxu0 0.0
    %1087 = vmatpush1.msra.mxu0 0.0
    %1088 = vmatprep.subr.mxu0 0.0
    %1089 = vmatpush1.msra.mxu0 0.0
    %1090 = vmatprep.subr.mxu0 0.0
    %1091 = vmatpush1.msra.mxu0 0.0
    %1092 = vmatprep.subr.mxu0 0.0
    %1093 = vmatpush1.msra.mxu0 0.0
    %1094 = vmatprep.subr.mxu0 0.0
    %1095 = vmatpush1.msra.mxu0 0.0
    %1096 = vmatprep.subr.mxu0 0.0
    %1097 = vmatpush1.msra.mxu0 0.0
    %1098 = vmatprep.subr.mxu0 0.0
    %1099 = vmatpush1.msra.mxu0 0.0
    %1100 = vmatprep.subr.mxu0 0.0
    %1101 = vmatpush1.msra.mxu0 0.0
    %1102 = vmatprep.subr.mxu0 0.0
    %1103 = vmatpush1.msra.mxu0 0.0
    %1104 = vmatprep.subr.mxu0 0.0
    %1105 = vmatpush1.msra.mxu0 0.0
    %1106 = vmatprep.subr.mxu0 0.0
    %1107 = vmatpush1.msra.mxu0 0.0
    %1108 = vmatprep.subr.mxu0 0.0
    %1109 = vmatpush1.msra.mxu0 0.0
    %1110 = vmatprep.subr.mxu0 0.0
    %1111 = vmatpush1.msra.mxu0 0.0
    %1112 = vmatprep.subr.mxu0 0.0
    %1113 = vmatpush1.msra.mxu0 0.0
    %1114 = vmatprep.subr.mxu0 0.0
    %1115 = vmatpush1.msra.mxu0 0.0
    %1116 = vmatprep.subr.mxu0 0.0
    %1117 = vmatpush1.msra.mxu0 0.0
    %1118 = vmatprep.subr.mxu0 0.0
    %1119 = vmatpush1.msra.mxu0 0.0
    %1120 = vmatprep.subr.mxu0 0.0
    %1121 = vmatpush1.msra.mxu0 0.0
    %1122 = vmatprep.subr.mxu0 0.0
    %1123 = vmatpush1.msra.mxu0 0.0
    %1124 = vmatprep.subr.mxu0 0.0
    %1125 = vmatpush1.msra.mxu0 0.0
    %1126 = vmatprep.mubr.f32.mxu0 0.0
    %1127 = vmatmul.mubr.f32.gmra.mrb[0].mxu0 %v1060
    %v1128 = vpop.f32.mrb[0].mxu0
    %v1129 = vadd.f32 0.0, %v1128
    %v1130 = vpop.f32.mrb[0].mxu0
    %v1131 = vadd.f32 0.0, %v1130
    %1132 = vdwg.mxu0
    %v1133 = vadd.f32 %v1054, %v1129
    %v1134 = vadd.f32 %v1056, %v1131
    %1135 = vmatprep.subr.mxu0 %v878
    %1136 = vmatpush1.msra.mxu0 %v877
    %1137 = vmatprep.subr.mxu0 %v880
    %1138 = vmatpush1.msra.mxu0 %v879
    %1139 = vmatprep.subr.mxu0 %v882
    %1140 = vmatpush1.msra.mxu0 %v881
    %1141 = vmatprep.subr.mxu0 %v884
    %1142 = vmatpush1.msra.mxu0 %v883
    %1143 = vmatprep.subr.mxu0 %v886
    %1144 = vmatpush1.msra.mxu0 %v885
    %1145 = vmatprep.subr.mxu0 %v888
    %1146 = vmatpush1.msra.mxu0 %v887
    %1147 = vmatprep.subr.mxu0 %v890
    %1148 = vmatpush1.msra.mxu0 %v889
    %1149 = vmatprep.subr.mxu0 %v892
    %1150 = vmatpush1.msra.mxu0 %v891
    %1151 = vmatprep.subr.mxu0 %v894
    %1152 = vmatpush1.msra.mxu0 %v893
    %1153 = vmatprep.subr.mxu0 %v896
    %1154 = vmatpush1.msra.mxu0 %v895
    %1155 = vmatprep.subr.mxu0 %v898
    %1156 = vmatpush1.msra.mxu0 %v897
    %1157 = vmatprep.subr.mxu0 %v900
    %1158 = vmatpush1.msra.mxu0 %v899
    %1159 = vmatprep.subr.mxu0 %v902
    %1160 = vmatpush1.msra.mxu0 %v901
    %1161 = vmatprep.subr.mxu0 %v904
    %1162 = vmatpush1.msra.mxu0 %v903
    %1163 = vmatprep.subr.mxu0 %v906
    %1164 = vmatpush1.msra.mxu0 %v905
    %1165 = vmatprep.subr.mxu0 %v908
    %1166 = vmatpush1.msra.mxu0 %v907
    %1167 = vmatprep.subr.mxu0 0.0
    %1168 = vmatpush1.msra.mxu0 0.0
    %1169 = vmatprep.subr.mxu0 0.0
    %1170 = vmatpush1.msra.mxu0 0.0
    %1171 = vmatprep.subr.mxu0 0.0
    %1172 = vmatpush1.msra.mxu0 0.0
    %1173 = vmatprep.subr.mxu0 0.0
    %1174 = vmatpush1.msra.mxu0 0.0
    %1175 = vmatprep.subr.mxu0 0.0
    %1176 = vmatpush1.msra.mxu0 0.0
    %1177 = vmatprep.subr.mxu0 0.0
    %1178 = vmatpush1.msra.mxu0 0.0
    %1179 = vmatprep.subr.mxu0 0.0
    %1180 = vmatpush1.msra.mxu0 0.0
    %1181 = vmatprep.subr.mxu0 0.0
    %1182 = vmatpush1.msra.mxu0 0.0
    %1183 = vmatprep.subr.mxu0 0.0
    %1184 = vmatpush1.msra.mxu0 0.0
    %1185 = vmatprep.subr.mxu0 0.0
    %1186 = vmatpush1.msra.mxu0 0.0
    %1187 = vmatprep.subr.mxu0 0.0
    %1188 = vmatpush1.msra.mxu0 0.0
    %1189 = vmatprep.subr.mxu0 0.0
    %1190 = vmatpush1.msra.mxu0 0.0
    %1191 = vmatprep.subr.mxu0 0.0
    %1192 = vmatpush1.msra.mxu0 0.0
    %1193 = vmatprep.subr.mxu0 0.0
    %1194 = vmatpush1.msra.mxu0 0.0
    %1195 = vmatprep.subr.mxu0 0.0
    %1196 = vmatpush1.msra.mxu0 0.0
    %1197 = vmatprep.subr.mxu0 0.0
    %1198 = vmatpush1.msra.mxu0 0.0
    %1199 = vmatprep.mubr.f32.mxu0 0.0
    %1200 = vmatmul.mubr.f32.gmra.mrb[0].mxu0 %v828
    %v1201 = vpop.f32.mrb[0].mxu0
    %v1202 = vadd.f32 0.0, %v1201
    %v1203 = vpop.f32.mrb[0].mxu0
    %v1204 = vadd.f32 0.0, %v1203
    %1205 = vdwg.mxu0
    %v1206 = vadd.f32 %v1133, %v1202
    %v1207 = vadd.f32 %v1134, %v1204
    %v1208 = vld [vmem:[%s6] sm:$0x3]
    %v1210 = vlaneseq
    %v1211 = vshrl.u32 %v1210, 7
    %v1212 = vsub.s32 0, %v1211
    %v1213 = vrot.slane %v1208, %v1212
    %v1214 = vlaneseq
    %v1215 = vshrl.u32 %v1214, 7
    %v1216 = vsub.s32 1, %v1215
    %v1217 = vrot.slane %v1208, %v1216
    %v1220 = vadd.f32 %v1206, %v1213
    %v1221 = vadd.f32 %v1207, %v1217
    %1222 = vst [vmem:[#allocation8] sm:$0x3] %v810
    %1223 = vst [vmem:[#allocation8 + $0x2] sm:$0x3] %v1220
    %v1224 = vxor.u32 %v1221, 2147483648
    %v1225 = vmul.f32 %v1224, 1.442695
    %v1226 = vpow.pop %v1225
    %v1227 = vadd.f32 %v1226, 1.0
    %v1228 = vrcp.pop %v1227
    %v1229 = vmul.f32 1.0, %v1228
    %1230 = vst [vmem:[#allocation8 + $0x4] sm:$0x3] %v1229
    // Predicated region
    $region42: #{tpu_custom_call.1} parent=1 // pred_check
      _
    $region43: #{tpu_custom_call.1} parent=1 // pred_check_branch
      %1232 = sbr.rel (0) target = $region45
    $region44: #{tpu_custom_call.1} parent=1 // pred_region
      %s1234 = ssub.s32 96, 96
      %1235 = vsyncadd [#allocation4], %s1234
      %s1237 = sshll.u32 [#allocation8], 4
      %s1238 = int_to_ptr.vmem [resolvable:$true] %s1237
      %1240 = dma.vmem_to_hbm [thread:$0]  %s1238, 96, %s7, [#allocation4]
    $region45: #{tpu_custom_call.1} parent=1 // pred_fallthru
      _
    // Predicated region
    $region46: #{tpu_custom_call.1} parent=1 // pred_check
      _
    $region47: #{tpu_custom_call.1} parent=1 // pred_check_branch
      %1242 = sbr.rel (0) target = $region49
    $region48: #{tpu_custom_call.1} parent=1 // pred_region
      %1243 = dma.done [#allocation4], 96
    $region49: #{tpu_custom_call.1} parent=1 // pred_fallthru
      _
    %1244 = vsyncpa [#allocation3], 1
    %1245 = vsyncpa [#allocation6], 1
    %1246 = vsyncpa [#allocation4], 1

// kernel: tpu_custom_call.1
$region0: #{tpu_custom_call.1}
  #allocation0 [shape = 'u32[]', space=smem, size = 0x4, offset = 0x4, fixed_abs, tag = 'smem constant byte address 0x4 - core index']
  #allocation1 [shape = 'u32[144,128]{1,0:T(1,128)}', space=vmem, size = 0x12000, scoped, tag = 'internal scratch']
  #allocation9 [shape = 's32[]', space=sflag, size = 0x4, offset = 0, fixed_abs, tag = 'sflag constant byte address 0x0 - dummy sync flag']
  %s0 = inlined_call_operand.hbm [shape: f32[2,192,128], index: 0, kind: input, shape index: {}]
  %s1 = inlined_call_operand.vmem [shape: f32[2,64], index: 1, kind: input, shape index: {}]
  %s2 = inlined_call_operand.vmem [shape: f32[2,128], index: 2, kind: input, shape index: {}]
  %s3 = inlined_call_operand.hbm [shape: f32[3,128,384], index: 3, kind: input, shape index: {}]
  %s4 = inlined_call_operand.vmem [shape: f32[1,384], index: 4, kind: input, shape index: {}]
  %s5 = inlined_call_operand.hbm [shape: f32[320,256], index: 5, kind: input, shape index: {}]
  %s6 = inlined_call_operand.vmem [shape: f32[1,256], index: 6, kind: input, shape index: {}]
  %s7 = inlined_call_operand.hbm [shape: f32[2,384], index: 7, kind: output, shape index: {}]
  %s8 = sld [smem:[#allocation0]]
  $region50: #{tpu_custom_call.1} parent=0
    _
  %s10 = ssub.s32 1, %s8
  %s11 = scalar_select 0, %s10, %s8
  $region1: #{tpu_custom_call.1} parent=0
    #allocation2 [shape = 'u8[65536]{0}', space=vmem, size = 0x10000, scoped, tag = 'input window, operand 0, single buffered']
    #allocation3 [shape = 's32[1]{0}', space=sflag, size = 0x4, scoped, tag = 'scoped memory for tpu_custom_call.1']
    #allocation4 [shape = 's32[1]{0}', space=sflag, size = 0x4, scoped, tag = 'scoped memory for tpu_custom_call.1']
    #allocation5 [shape = 'u8[589824]{0}', space=vmem, size = 0x90000, scoped, tag = 'input window, operand 3, single buffered']
    #allocation6 [shape = 's32[1]{0}', space=sflag, size = 0x4, scoped, tag = 'scoped memory for tpu_custom_call.1']
    #allocation7 [shape = 'u8[327680]{0}', space=vmem, size = 0x50000, scoped, tag = 'input window, operand 5, single buffered']
    #allocation8 [shape = 'u8[3072]{0}', space=vmem, size = 0xc00, scoped, tag = 'output window, operand 0, single buffered']
    %12 = vsyncpa [#allocation3], 0
    %13 = vsyncpa [#allocation6], 0
    %14 = vsyncpa [#allocation4], 0
    // Predicated region
    $region2: #{tpu_custom_call.1} parent=1 // pred_check
      _
    $region3: #{tpu_custom_call.1} parent=1 // pred_check_branch
      %16 = sbr.rel (0) target = $region5
    $region4: #{tpu_custom_call.1} parent=1 // pred_region
      #allocation10 [shape = 'u32[6]{0}', space=smem, size = 0x18, scoped, tag = 'DMA stride descriptor']
      %s18 = ssub.s32 2048, 2048
      %19 = vsyncadd [#allocation3], %s18
      %s20 = scalar_lea.hbm %s0, 2048
      %s22 = sshll.u32 1, 14
      %s23 = sxor.u32 4294967295, %s22
      %s25 = sld [smem:[#allocation0]]
      %s26 = sadd.s32 2, %s25
      %s28 = sshll.u32 7, 26
      %s29 = sxor.u32 4294967295, %s28
      %s30 = sand.u32 0, %s29
      %s31 = sshll.u32 %s26, 26
      %s32 = sor.u32 %s30, %s31
      %s33 = sshll.u32 [#allocation2], 4
      %s34 = int_to_ptr.vmem [resolvable:$true] %s33
      %40 = sst [smem:[#allocation10]] 3072
      %s41 = scalar_lea.smem [#allocation10], 1
      %42 = sst [smem:[%s41]] 1024
      %s43 = scalar_lea.smem [#allocation10], 2
      %44 = sst [smem:[%s43]] 8
      %s45 = scalar_lea.smem [#allocation10], 3
      %46 = sst [smem:[%s45]] 128
      %s47 = scalar_lea.smem [#allocation10], 4
      %48 = sst [smem:[%s47]] 128
      %s49 = scalar_lea.smem [#allocation10], 5
      %50 = sst [smem:[%s49]] 8
      %52 = dma.general %s20, 2048, %s34, [#allocation3], [#allocation9], [#allocation10], %s32, 0
    $region5: #{tpu_custom_call.1} parent=1 // pred_fallthru
      _
    // Predicated region
    $region6: #{tpu_custom_call.1} parent=1 // pred_check
      _
    $region7: #{tpu_custom_call.1} parent=1 // pred_check_branch
      %54 = sbr.rel (0) target = $region9
    $region8: #{tpu_custom_call.1} parent=1 // pred_region
      _
    $region9: #{tpu_custom_call.1} parent=1 // pred_fallthru
      _
    // Predicated region
    $region10: #{tpu_custom_call.1} parent=1 // pred_check
      _
    $region11: #{tpu_custom_call.1} parent=1 // pred_check_branch
      %56 = sbr.rel (0) target = $region13
    $region12: #{tpu_custom_call.1} parent=1 // pred_region
      _
    $region13: #{tpu_custom_call.1} parent=1 // pred_fallthru
      _
    // Predicated region
    $region14: #{tpu_custom_call.1} parent=1 // pred_check
      _
    $region15: #{tpu_custom_call.1} parent=1 // pred_check_branch
      %58 = sbr.rel (0) target = $region17
    $region16: #{tpu_custom_call.1} parent=1 // pred_region
      %s60 = ssub.s32 18432, 18432
      %61 = vsyncadd [#allocation6], %s60
      %s62 = sshll.u32 [#allocation5], 4
      %s63 = int_to_ptr.vmem [resolvable:$true] %s62
      %68 = dma.hbm_to_vmem [thread:$0]  %s3, 18432, %s63, [#allocation6], 384, 384, 24
    $region17: #{tpu_custom_call.1} parent=1 // pred_fallthru
      _
    // Predicated region
    $region18: #{tpu_custom_call.1} parent=1 // pred_check
      _
    $region19: #{tpu_custom_call.1} parent=1 // pred_check_branch
      %70 = sbr.rel (0) target = $region21
    $region20: #{tpu_custom_call.1} parent=1 // pred_region
      _
    $region21: #{tpu_custom_call.1} parent=1 // pred_fallthru
      _
    // Predicated region
    $region22: #{tpu_custom_call.1} parent=1 // pred_check
      _
    $region23: #{tpu_custom_call.1} parent=1 // pred_check_branch
      %72 = sbr.rel (0) target = $region25
    $region24: #{tpu_custom_call.1} parent=1 // pred_region
      %s74 = ssub.s32 10240, 10240
      %75 = vsyncadd [#allocation6], %s74
      %s76 = sshll.u32 [#allocation7], 4
      %s77 = int_to_ptr.vmem [resolvable:$true] %s76
      %82 = dma.hbm_to_vmem [thread:$0]  %s5, 10240, %s77, [#allocation6], 256, 256, 16
    $region25: #{tpu_custom_call.1} parent=1 // pred_fallthru
      _
    // Predicated region
    $region26: #{tpu_custom_call.1} parent=1 // pred_check
      _
    $region27: #{tpu_custom_call.1} parent=1 // pred_check_branch
      %84 = sbr.rel (0) target = $region29
    $region28: #{tpu_custom_call.1} parent=1 // pred_region
      _
    $region29: #{tpu_custom_call.1} parent=1 // pred_fallthru
      _
    // Predicated region
    $region30: #{tpu_custom_call.1} parent=1 // pred_check
      _
    $region31: #{tpu_custom_call.1} parent=1 // pred_check_branch
      %86 = sbr.rel (0) target = $region33
    $region32: #{tpu_custom_call.1} parent=1 // pred_region
      %87 = dma.done [#allocation3], 2048
    $region33: #{tpu_custom_call.1} parent=1 // pred_fallthru
      _
    // Predicated region
    $region34: #{tpu_custom_call.1} parent=1 // pred_check
      _
    $region35: #{tpu_custom_call.1} parent=1 // pred_check_branch
      %89 = sbr.rel (0) target = $region37
    $region36: #{tpu_custom_call.1} parent=1 // pred_region
      %90 = dma.done [#allocation6], 18432
    $region37: #{tpu_custom_call.1} parent=1 // pred_fallthru
      _
    // Predicated region
    $region38: #{tpu_custom_call.1} parent=1 // pred_check
      _
    $region39: #{tpu_custom_call.1} parent=1 // pred_check_branch
      %92 = sbr.rel (0) target = $region41
    $region40: #{tpu_custom_call.1} parent=1 // pred_region
      %93 = dma.done [#allocation6], 10240
    $region41: #{tpu_custom_call.1} parent=1 // pred_fallthru
      _
    %v94 = vld [vmem:[#allocation2] sm:$0xff]
    %v95 = vld [vmem:[#allocation2 + $0x8] sm:$0xff]
    %v96 = vld [vmem:[#allocation2 + $0x10] sm:$0xff]
    %v97 = vld [vmem:[#allocation2 + $0x18] sm:$0xff]
    %v98 = vld [vmem:[#allocation2 + $0x20] sm:$0xff]
    %v99 = vld [vmem:[#allocation2 + $0x28] sm:$0xff]
    %v100 = vld [vmem:[#allocation2 + $0x30] sm:$0xff]
    %v101 = vld [vmem:[#allocation2 + $0x38] sm:$0xff]
    %v102 = vld [vmem:[#allocation2 + $0x40] sm:$0xff]
    %v103 = vld [vmem:[#allocation2 + $0x48] sm:$0xff]
    %v104 = vld [vmem:[#allocation2 + $0x50] sm:$0xff]
    %v105 = vld [vmem:[#allocation2 + $0x58] sm:$0xff]
    %v106 = vld [vmem:[#allocation2 + $0x60] sm:$0xff]
    %v107 = vld [vmem:[#allocation2 + $0x68] sm:$0xff]
    %v108 = vld [vmem:[#allocation2 + $0x70] sm:$0xff]
    %v109 = vld [vmem:[#allocation2 + $0x78] sm:$0xff]
    %vm118 = vcmask 1046528
    %v119 = vrot.slane %v94, 1
    %v120 = vrot.slane %v95, 1
    %v121 = vsel %vm118, %v119, %v120
    %v122 = vrot.slane %v96, 1
    %v123 = vsel %vm118, %v120, %v122
    %v124 = vrot.slane %v97, 1
    %v125 = vsel %vm118, %v122, %v124
    %v126 = vrot.slane %v102, 1
    %v127 = vrot.slane %v103, 1
    %v128 = vsel %vm118, %v126, %v127
    %v129 = vrot.slane %v104, 1
    %v130 = vsel %vm118, %v127, %v129
    %v131 = vrot.slane %v105, 1
    %v132 = vsel %vm118, %v129, %v131
    %v141 = vadd.f32 %v121, %v123
    %v142 = vadd.f32 %v141, %v125
    %v143 = vsel %vm118, %v124, 0.0
    %v144 = vadd.f32 %v142, %v143
    %v145 = vrot.slane %v144, 4
    %v146 = vadd.f32 %v144, %v145
    %v147 = vrot.slane %v146, 2
    %v148 = vadd.f32 %v146, %v147
    %v149 = vrot.slane %v148, 1
    %v150 = vadd.f32 %v148, %v149
    %v151 = vadd.f32 %v128, %v130
    %v152 = vadd.f32 %v151, %v132
    %v153 = vsel %vm118, %v131, 0.0
    %v154 = vadd.f32 %v152, %v153
    %v155 = vrot.slane %v154, 4
    %v156 = vadd.f32 %v154, %v155
    %v157 = vrot.slane %v156, 2
    %v158 = vadd.f32 %v156, %v157
    %v159 = vrot.slane %v158, 1
    %v160 = vadd.f32 %v158, %v159
    %v169 = vrot.slane %v98, 1
    %v170 = vrot.slane %v99, 1
    %v171 = vsel %vm118, %v169, %v170
    %v172 = vrot.slane %v100, 1
    %v173 = vsel %vm118, %v170, %v172
    %v174 = vrot.slane %v101, 1
    %v175 = vsel %vm118, %v172, %v174
    %v176 = vrot.slane %v106, 1
    %v177 = vrot.slane %v107, 1
    %v178 = vsel %vm118, %v176, %v177
    %v179 = vrot.slane %v108, 1
    %v180 = vsel %vm118, %v177, %v179
    %v181 = vrot.slane %v109, 1
    %v182 = vsel %vm118, %v179, %v181
    %v191 = vadd.f32 %v171, %v173
    %v192 = vadd.f32 %v191, %v175
    %v193 = vsel %vm118, %v174, 0.0
    %v194 = vadd.f32 %v192, %v193
    %v195 = vrot.slane %v194, 4
    %v196 = vadd.f32 %v194, %v195
    %v197 = vrot.slane %v196, 2
    %v198 = vadd.f32 %v196, %v197
    %v199 = vrot.slane %v198, 1
    %v200 = vadd.f32 %v198, %v199
    %v201 = vadd.f32 %v178, %v180
    %v202 = vadd.f32 %v201, %v182
    %v203 = vsel %vm118, %v181, 0.0
    %v204 = vadd.f32 %v202, %v203
    %v205 = vrot.slane %v204, 4
    %v206 = vadd.f32 %v204, %v205
    %v207 = vrot.slane %v206, 2
    %v208 = vadd.f32 %v206, %v207
    %v209 = vrot.slane %v208, 1
    %v210 = vadd.f32 %v208, %v209
    %v211 = vld [vmem:[#allocation5] sm:$0xff]
    %v212 = vld [vmem:[#allocation5 + $0x8] sm:$0xff]
    %v213 = vld [vmem:[#allocation5 + $0x10] sm:$0xff]
    %v214 = vld [vmem:[#allocation5 + $0x18] sm:$0xff]
    %v215 = vld [vmem:[#allocation5 + $0x20] sm:$0xff]
    %v216 = vld [vmem:[#allocation5 + $0x28] sm:$0xff]
    %v217 = vld [vmem:[#allocation5 + $0x30] sm:$0xff]
    %v218 = vld [vmem:[#allocation5 + $0x38] sm:$0xff]
    %v219 = vld [vmem:[#allocation5 + $0x40] sm:$0xff]
    %v220 = vld [vmem:[#allocation5 + $0x48] sm:$0xff]
    %v221 = vld [vmem:[#allocation5 + $0x50] sm:$0xff]
    %v222 = vld [vmem:[#allocation5 + $0x58] sm:$0xff]
    %v223 = vld [vmem:[#allocation5 + $0x60] sm:$0xff]
    %v224 = vld [vmem:[#allocation5 + $0x68] sm:$0xff]
    %v225 = vld [vmem:[#allocation5 + $0x70] sm:$0xff]
    %v226 = vld [vmem:[#allocation5 + $0x78] sm:$0xff]
    %v227 = vld [vmem:[#allocation5 + $0x80] sm:$0xff]
    %v228 = vld [vmem:[#allocation5 + $0x88] sm:$0xff]
    %v229 = vld [vmem:[#allocation5 + $0x90] sm:$0xff]
    %v230 = vld [vmem:[#allocation5 + $0x98] sm:$0xff]
    %v231 = vld [vmem:[#allocation5 + $0xa0] sm:$0xff]
    %v232 = vld [vmem:[#allocation5 + $0xa8] sm:$0xff]
    %v233 = vld [vmem:[#allocation5 + $0xb0] sm:$0xff]
    %v234 = vld [vmem:[#allocation5 + $0xb8] sm:$0xff]
    %v235 = vld [vmem:[#allocation5 + $0xc0] sm:$0xff]
    %v236 = vld [vmem:[#allocation5 + $0xc8] sm:$0xff]
    %v237 = vld [vmem:[#allocation5 + $0xd0] sm:$0xff]
    %v238 = vld [vmem:[#allocation5 + $0xd8] sm:$0xff]
    %v239 = vld [vmem:[#allocation5 + $0xe0] sm:$0xff]
    %v240 = vld [vmem:[#allocation5 + $0xe8] sm:$0xff]
    %v241 = vld [vmem:[#allocation5 + $0xf0] sm:$0xff]
    %v242 = vld [vmem:[#allocation5 + $0xf8] sm:$0xff]
    %v243 = vld [vmem:[#allocation5 + $0x100] sm:$0xff]
    %v244 = vld [vmem:[#allocation5 + $0x108] sm:$0xff]
    %v245 = vld [vmem:[#allocation5 + $0x110] sm:$0xff]
    %v246 = vld [vmem:[#allocation5 + $0x118] sm:$0xff]
    %v247 = vld [vmem:[#allocation5 + $0x120] sm:$0xff]
    %v248 = vld [vmem:[#allocation5 + $0x128] sm:$0xff]
    %v249 = vld [vmem:[#allocation5 + $0x130] sm:$0xff]
    %v250 = vld [vmem:[#allocation5 + $0x138] sm:$0xff]
    %v251 = vld [vmem:[#allocation5 + $0x140] sm:$0xff]
    %v252 = vld [vmem:[#allocation5 + $0x148] sm:$0xff]
    %v253 = vld [vmem:[#allocation5 + $0x150] sm:$0xff]
    %v254 = vld [vmem:[#allocation5 + $0x158] sm:$0xff]
    %v255 = vld [vmem:[#allocation5 + $0x160] sm:$0xff]
    %v256 = vld [vmem:[#allocation5 + $0x168] sm:$0xff]
    %v257 = vld [vmem:[#allocation5 + $0x170] sm:$0xff]
    %v258 = vld [vmem:[#allocation5 + $0x178] sm:$0xff]
    %v259 = vld [vmem:[#allocation5 + $0x180] sm:$0xff]
    %v260 = vld [vmem:[#allocation5 + $0x188] sm:$0xff]
    %v261 = vld [vmem:[#allocation5 + $0x190] sm:$0xff]
    %v262 = vld [vmem:[#allocation5 + $0x198] sm:$0xff]
    %v263 = vld [vmem:[#allocation5 + $0x1a0] sm:$0xff]
    %v264 = vld [vmem:[#allocation5 + $0x1a8] sm:$0xff]
    %v265 = vld [vmem:[#allocation5 + $0x1b0] sm:$0xff]
    %v266 = vld [vmem:[#allocation5 + $0x1b8] sm:$0xff]
    %v267 = vld [vmem:[#allocation5 + $0x1c0] sm:$0xff]
    %v268 = vld [vmem:[#allocation5 + $0x1c8] sm:$0xff]
    %v269 = vld [vmem:[#allocation5 + $0x1d0] sm:$0xff]
    %v270 = vld [vmem:[#allocation5 + $0x1d8] sm:$0xff]
    %v271 = vld [vmem:[#allocation5 + $0x1e0] sm:$0xff]
    %v272 = vld [vmem:[#allocation5 + $0x1e8] sm:$0xff]
    %v273 = vld [vmem:[#allocation5 + $0x1f0] sm:$0xff]
    %v274 = vld [vmem:[#allocation5 + $0x1f8] sm:$0xff]
    %v275 = vld [vmem:[#allocation5 + $0x200] sm:$0xff]
    %v276 = vld [vmem:[#allocation5 + $0x208] sm:$0xff]
    %v277 = vld [vmem:[#allocation5 + $0x210] sm:$0xff]
    %v278 = vld [vmem:[#allocation5 + $0x218] sm:$0xff]
    %v279 = vld [vmem:[#allocation5 + $0x220] sm:$0xff]
    %v280 = vld [vmem:[#allocation5 + $0x228] sm:$0xff]
    %v281 = vld [vmem:[#allocation5 + $0x230] sm:$0xff]
    %v282 = vld [vmem:[#allocation5 + $0x238] sm:$0xff]
    %v283 = vld [vmem:[#allocation5 + $0x240] sm:$0xff]
    %v284 = vld [vmem:[#allocation5 + $0x248] sm:$0xff]
    %v285 = vld [vmem:[#allocation5 + $0x250] sm:$0xff]
    %v286 = vld [vmem:[#allocation5 + $0x258] sm:$0xff]
    %v287 = vld [vmem:[#allocation5 + $0x260] sm:$0xff]
    %v288 = vld [vmem:[#allocation5 + $0x268] sm:$0xff]
    %v289 = vld [vmem:[#allocation5 + $0x270] sm:$0xff]
    %v290 = vld [vmem:[#allocation5 + $0x278] sm:$0xff]
    %v291 = vld [vmem:[#allocation5 + $0x280] sm:$0xff]
    %v292 = vld [vmem:[#allocation5 + $0x288] sm:$0xff]
    %v293 = vld [vmem:[#allocation5 + $0x290] sm:$0xff]
    %v294 = vld [vmem:[#allocation5 + $0x298] sm:$0xff]
    %v295 = vld [vmem:[#allocation5 + $0x2a0] sm:$0xff]
    %v296 = vld [vmem:[#allocation5 + $0x2a8] sm:$0xff]
    %v297 = vld [vmem:[#allocation5 + $0x2b0] sm:$0xff]
    %v298 = vld [vmem:[#allocation5 + $0x2b8] sm:$0xff]
    %v299 = vld [vmem:[#allocation5 + $0x2c0] sm:$0xff]
    %v300 = vld [vmem:[#allocation5 + $0x2c8] sm:$0xff]
    %v301 = vld [vmem:[#allocation5 + $0x2d0] sm:$0xff]
    %v302 = vld [vmem:[#allocation5 + $0x2d8] sm:$0xff]
    %v303 = vld [vmem:[#allocation5 + $0x2e0] sm:$0xff]
    %v304 = vld [vmem:[#allocation5 + $0x2e8] sm:$0xff]
    %v305 = vld [vmem:[#allocation5 + $0x2f0] sm:$0xff]
    %v306 = vld [vmem:[#allocation5 + $0x2f8] sm:$0xff]
    %v307 = vld [vmem:[#allocation5 + $0x300] sm:$0xff]
    %v308 = vld [vmem:[#allocation5 + $0x308] sm:$0xff]
    %v309 = vld [vmem:[#allocation5 + $0x310] sm:$0xff]
    %v310 = vld [vmem:[#allocation5 + $0x318] sm:$0xff]
    %v311 = vld [vmem:[#allocation5 + $0x320] sm:$0xff]
    %v312 = vld [vmem:[#allocation5 + $0x328] sm:$0xff]
    %v313 = vld [vmem:[#allocation5 + $0x330] sm:$0xff]
    %v314 = vld [vmem:[#allocation5 + $0x338] sm:$0xff]
    %v315 = vld [vmem:[#allocation5 + $0x340] sm:$0xff]
    %v316 = vld [vmem:[#allocation5 + $0x348] sm:$0xff]
    %v317 = vld [vmem:[#allocation5 + $0x350] sm:$0xff]
    %v318 = vld [vmem:[#allocation5 + $0x358] sm:$0xff]
    %v319 = vld [vmem:[#allocation5 + $0x360] sm:$0xff]
    %v320 = vld [vmem:[#allocation5 + $0x368] sm:$0xff]
    %v321 = vld [vmem:[#allocation5 + $0x370] sm:$0xff]
    %v322 = vld [vmem:[#allocation5 + $0x378] sm:$0xff]
    %v323 = vld [vmem:[#allocation5 + $0x380] sm:$0xff]
    %v324 = vld [vmem:[#allocation5 + $0x388] sm:$0xff]
    %v325 = vld [vmem:[#allocation5 + $0x390] sm:$0xff]
    %v326 = vld [vmem:[#allocation5 + $0x398] sm:$0xff]
    %v327 = vld [vmem:[#allocation5 + $0x3a0] sm:$0xff]
    %v328 = vld [vmem:[#allocation5 + $0x3a8] sm:$0xff]
    %v329 = vld [vmem:[#allocation5 + $0x3b0] sm:$0xff]
    %v330 = vld [vmem:[#allocation5 + $0x3b8] sm:$0xff]
    %v331 = vld [vmem:[#allocation5 + $0x3c0] sm:$0xff]
    %v332 = vld [vmem:[#allocation5 + $0x3c8] sm:$0xff]
    %v333 = vld [vmem:[#allocation5 + $0x3d0] sm:$0xff]
    %v334 = vld [vmem:[#allocation5 + $0x3d8] sm:$0xff]
    %v335 = vld [vmem:[#allocation5 + $0x3e0] sm:$0xff]
    %v336 = vld [vmem:[#allocation5 + $0x3e8] sm:$0xff]
    %v337 = vld [vmem:[#allocation5 + $0x3f0] sm:$0xff]
    %v338 = vld [vmem:[#allocation5 + $0x3f8] sm:$0xff]
    %v339 = vld [vmem:[#allocation5 + $0x400] sm:$0xff]
    %v340 = vld [vmem:[#allocation5 + $0x408] sm:$0xff]
    %v341 = vld [vmem:[#allocation5 + $0x410] sm:$0xff]
    %v342 = vld [vmem:[#allocation5 + $0x418] sm:$0xff]
    %v343 = vld [vmem:[#allocation5 + $0x420] sm:$0xff]
    %v344 = vld [vmem:[#allocation5 + $0x428] sm:$0xff]
    %v345 = vld [vmem:[#allocation5 + $0x430] sm:$0xff]
    %v346 = vld [vmem:[#allocation5 + $0x438] sm:$0xff]
    %v347 = vld [vmem:[#allocation5 + $0x440] sm:$0xff]
    %v348 = vld [vmem:[#allocation5 + $0x448] sm:$0xff]
    %v349 = vld [vmem:[#allocation5 + $0x450] sm:$0xff]
    %v350 = vld [vmem:[#allocation5 + $0x458] sm:$0xff]
    %v351 = vld [vmem:[#allocation5 + $0x460] sm:$0xff]
    %v352 = vld [vmem:[#allocation5 + $0x468] sm:$0xff]
    %v353 = vld [vmem:[#allocation5 + $0x470] sm:$0xff]
    %v354 = vld [vmem:[#allocation5 + $0x478] sm:$0xff]
    %vm357 = vcmask 1041409
    %v358 = vsel %vm357, %v160, %v150
    %360 = vmatprep.subr.mxu0 %v260
    %361 = vmatpush1.msra.mxu0 %v259
    %362 = vmatprep.subr.mxu0 %v263
    %363 = vmatpush1.msra.mxu0 %v262
    %364 = vmatprep.subr.mxu0 %v266
    %365 = vmatpush1.msra.mxu0 %v265
    %366 = vmatprep.subr.mxu0 %v269
    %367 = vmatpush1.msra.mxu0 %v268
    %368 = vmatprep.subr.mxu0 %v272
    %369 = vmatpush1.msra.mxu0 %v271
    %370 = vmatprep.subr.mxu0 %v275
    %371 = vmatpush1.msra.mxu0 %v274
    %372 = vmatprep.subr.mxu0 %v278
    %373 = vmatpush1.msra.mxu0 %v277
    %374 = vmatprep.subr.mxu0 %v281
    %375 = vmatpush1.msra.mxu0 %v280
    %376 = vmatprep.subr.mxu0 %v284
    %377 = vmatpush1.msra.mxu0 %v283
    %378 = vmatprep.subr.mxu0 %v287
    %379 = vmatpush1.msra.mxu0 %v286
    %380 = vmatprep.subr.mxu0 %v290
    %381 = vmatpush1.msra.mxu0 %v289
    %382 = vmatprep.subr.mxu0 %v293
    %383 = vmatpush1.msra.mxu0 %v292
    %384 = vmatprep.subr.mxu0 %v296
    %385 = vmatpush1.msra.mxu0 %v295
    %386 = vmatprep.subr.mxu0 %v299
    %387 = vmatpush1.msra.mxu0 %v298
    %388 = vmatprep.subr.mxu0 %v302
    %389 = vmatpush1.msra.mxu0 %v301
    %390 = vmatprep.subr.mxu0 %v305
    %391 = vmatpush1.msra.mxu0 %v304
    %392 = vmatprep.subr.mxu0 0.0
    %393 = vmatpush1.msra.mxu0 0.0
    %394 = vmatprep.subr.mxu0 0.0
    %395 = vmatpush1.msra.mxu0 0.0
    %396 = vmatprep.subr.mxu0 0.0
    %397 = vmatpush1.msra.mxu0 0.0
    %398 = vmatprep.subr.mxu0 0.0
    %399 = vmatpush1.msra.mxu0 0.0
    %400 = vmatprep.subr.mxu0 0.0
    %401 = vmatpush1.msra.mxu0 0.0
    %402 = vmatprep.subr.mxu0 0.0
    %403 = vmatpush1.msra.mxu0 0.0
    %404 = vmatprep.subr.mxu0 0.0
    %405 = vmatpush1.msra.mxu0 0.0
    %406 = vmatprep.subr.mxu0 0.0
    %407 = vmatpush1.msra.mxu0 0.0
    %408 = vmatprep.subr.mxu0 0.0
    %409 = vmatpush1.msra.mxu0 0.0
    %410 = vmatprep.subr.mxu0 0.0
    %411 = vmatpush1.msra.mxu0 0.0
    %412 = vmatprep.subr.mxu0 0.0
    %413 = vmatpush1.msra.mxu0 0.0
    %414 = vmatprep.subr.mxu0 0.0
    %415 = vmatpush1.msra.mxu0 0.0
    %416 = vmatprep.subr.mxu0 0.0
    %417 = vmatpush1.msra.mxu0 0.0
    %418 = vmatprep.subr.mxu0 0.0
    %419 = vmatpush1.msra.mxu0 0.0
    %420 = vmatprep.subr.mxu0 0.0
    %421 = vmatpush1.msra.mxu0 0.0
    %422 = vmatprep.subr.mxu0 0.0
    %423 = vmatpush1.msra.mxu0 0.0
    %424 = vmatprep.mubr.f32.mxu0 0.0
    %425 = vmatmul.mubr.f32.gmra.mrb[0].mxu0 %v358
    %v426 = vpop.f32.mrb[0].mxu0
    %v427 = vadd.f32 0.0, %v426
    %v428 = vpop.f32.mrb[0].mxu0
    %v429 = vadd.f32 0.0, %v428
    %430 = vdwg.mxu0
    %431 = vmatprep.subr.mxu0 0.0
    %432 = vmatpush1.msra.mxu0 %v261
    %433 = vmatprep.subr.mxu0 0.0
    %434 = vmatpush1.msra.mxu0 %v264
    %435 = vmatprep.subr.mxu0 0.0
    %436 = vmatpush1.msra.mxu0 %v267
    %437 = vmatprep.subr.mxu0 0.0
    %438 = vmatpush1.msra.mxu0 %v270
    %439 = vmatprep.subr.mxu0 0.0
    %440 = vmatpush1.msra.mxu0 %v273
    %441 = vmatprep.subr.mxu0 0.0
    %442 = vmatpush1.msra.mxu0 %v276
    %443 = vmatprep.subr.mxu0 0.0
    %444 = vmatpush1.msra.mxu0 %v279
    %445 = vmatprep.subr.mxu0 0.0
    %446 = vmatpush1.msra.mxu0 %v282
    %447 = vmatprep.subr.mxu0 0.0
    %448 = vmatpush1.msra.mxu0 %v285
    %449 = vmatprep.subr.mxu0 0.0
    %450 = vmatpush1.msra.mxu0 %v288
    %451 = vmatprep.subr.mxu0 0.0
    %452 = vmatpush1.msra.mxu0 %v291
    %453 = vmatprep.subr.mxu0 0.0
    %454 = vmatpush1.msra.mxu0 %v294
    %455 = vmatprep.subr.mxu0 0.0
    %456 = vmatpush1.msra.mxu0 %v297
    %457 = vmatprep.subr.mxu0 0.0
    %458 = vmatpush1.msra.mxu0 %v300
    %459 = vmatprep.subr.mxu0 0.0
    %460 = vmatpush1.msra.mxu0 %v303
    %461 = vmatprep.subr.mxu0 0.0
    %462 = vmatpush1.msra.mxu0 %v306
    %463 = vmatprep.subr.mxu0 0.0
    %464 = vmatpush1.msra.mxu0 0.0
    %465 = vmatprep.subr.mxu0 0.0
    %466 = vmatpush1.msra.mxu0 0.0
    %467 = vmatprep.subr.mxu0 0.0
    %468 = vmatpush1.msra.mxu0 0.0
    %469 = vmatprep.subr.mxu0 0.0
    %470 = vmatpush1.msra.mxu0 0.0
    %471 = vmatprep.subr.mxu0 0.0
    %472 = vmatpush1.msra.mxu0 0.0
    %473 = vmatprep.subr.mxu0 0.0
    %474 = vmatpush1.msra.mxu0 0.0
    %475 = vmatprep.subr.mxu0 0.0
    %476 = vmatpush1.msra.mxu0 0.0
    %477 = vmatprep.subr.mxu0 0.0
    %478 = vmatpush1.msra.mxu0 0.0
    %479 = vmatprep.subr.mxu0 0.0
    %480 = vmatpush1.msra.mxu0 0.0
    %481 = vmatprep.subr.mxu0 0.0
    %482 = vmatpush1.msra.mxu0 0.0
    %483 = vmatprep.subr.mxu0 0.0
    %484 = vmatpush1.msra.mxu0 0.0
    %485 = vmatprep.subr.mxu0 0.0
    %486 = vmatpush1.msra.mxu0 0.0
    %487 = vmatprep.subr.mxu0 0.0
    %488 = vmatpush1.msra.mxu0 0.0
    %489 = vmatprep.subr.mxu0 0.0
    %490 = vmatpush1.msra.mxu0 0.0
    %491 = vmatprep.subr.mxu0 0.0
    %492 = vmatpush1.msra.mxu0 0.0
    %493 = vmatprep.subr.mxu0 0.0
    %494 = vmatpush1.msra.mxu0 0.0
    %495 = vmatprep.mubr.f32.mxu0 0.0
    %496 = vmatmul.mubr.f32.gmra.mrb[0].mxu0 %v358
    %v497 = vpop.f32.mrb[0].mxu0
    %v498 = vadd.f32 0.0, %v497
    %v499 = vpop.f32.mrb[0].mxu0
    %500 = vdwg.mxu0
    %v501 = vrot.slane %v106, 7
    %v502 = vsel %vm357, %v501, %v98
    %504 = vmatprep.subr.mxu0 %v212
    %505 = vmatpush1.msra.mxu0 %v211
    %506 = vmatprep.subr.mxu0 %v215
    %507 = vmatpush1.msra.mxu0 %v214
    %508 = vmatprep.subr.mxu0 %v218
    %509 = vmatpush1.msra.mxu0 %v217
    %510 = vmatprep.subr.mxu0 %v221
    %511 = vmatpush1.msra.mxu0 %v220
    %512 = vmatprep.subr.mxu0 %v224
    %513 = vmatpush1.msra.mxu0 %v223
    %514 = vmatprep.subr.mxu0 %v227
    %515 = vmatpush1.msra.mxu0 %v226
    %516 = vmatprep.subr.mxu0 %v230
    %517 = vmatpush1.msra.mxu0 %v229
    %518 = vmatprep.subr.mxu0 %v233
    %519 = vmatpush1.msra.mxu0 %v232
    %520 = vmatprep.subr.mxu0 %v236
    %521 = vmatpush1.msra.mxu0 %v235
    %522 = vmatprep.subr.mxu0 %v239
    %523 = vmatpush1.msra.mxu0 %v238
    %524 = vmatprep.subr.mxu0 %v242
    %525 = vmatpush1.msra.mxu0 %v241
    %526 = vmatprep.subr.mxu0 %v245
    %527 = vmatpush1.msra.mxu0 %v244
    %528 = vmatprep.subr.mxu0 %v248
    %529 = vmatpush1.msra.mxu0 %v247
    %530 = vmatprep.subr.mxu0 %v251
    %531 = vmatpush1.msra.mxu0 %v250
    %532 = vmatprep.subr.mxu0 %v254
    %533 = vmatpush1.msra.mxu0 %v253
    %534 = vmatprep.subr.mxu0 %v257
    %535 = vmatpush1.msra.mxu0 %v256
    %536 = vmatprep.subr.mxu0 0.0
    %537 = vmatpush1.msra.mxu0 0.0
    %538 = vmatprep.subr.mxu0 0.0
    %539 = vmatpush1.msra.mxu0 0.0
    %540 = vmatprep.subr.mxu0 0.0
    %541 = vmatpush1.msra.mxu0 0.0
    %542 = vmatprep.subr.mxu0 0.0
    %543 = vmatpush1.msra.mxu0 0.0
    %544 = vmatprep.subr.mxu0 0.0
    %545 = vmatpush1.msra.mxu0 0.0
    %546 = vmatprep.subr.mxu0 0.0
    %547 = vmatpush1.msra.mxu0 0.0
    %548 = vmatprep.subr.mxu0 0.0
    %549 = vmatpush1.msra.mxu0 0.0
    %550 = vmatprep.subr.mxu0 0.0
    %551 = vmatpush1.msra.mxu0 0.0
    %552 = vmatprep.subr.mxu0 0.0
    %553 = vmatpush1.msra.mxu0 0.0
    %554 = vmatprep.subr.mxu0 0.0
    %555 = vmatpush1.msra.mxu0 0.0
    %556 = vmatprep.subr.mxu0 0.0
    %557 = vmatpush1.msra.mxu0 0.0
    %558 = vmatprep.subr.mxu0 0.0
    %559 = vmatpush1.msra.mxu0 0.0
    %560 = vmatprep.subr.mxu0 0.0
    %561 = vmatpush1.msra.mxu0 0.0
    %562 = vmatprep.subr.mxu0 0.0
    %563 = vmatpush1.msra.mxu0 0.0
    %564 = vmatprep.subr.mxu0 0.0
    %565 = vmatpush1.msra.mxu0 0.0
    %566 = vmatprep.subr.mxu0 0.0
    %567 = vmatpush1.msra.mxu0 0.0
    %568 = vmatprep.mubr.f32.mxu0 0.0
    %569 = vmatmul.mubr.f32.gmra.mrb[0].mxu0 %v502
    %v570 = vpop.f32.mrb[0].mxu0
    %v571 = vadd.f32 %v427, %v570
    %v572 = vpop.f32.mrb[0].mxu0
    %v573 = vadd.f32 %v429, %v572
    %574 = vdwg.mxu0
    %575 = vmatprep.subr.mxu0 0.0
    %576 = vmatpush1.msra.mxu0 %v213
    %577 = vmatprep.subr.mxu0 0.0
    %578 = vmatpush1.msra.mxu0 %v216
    %579 = vmatprep.subr.mxu0 0.0
    %580 = vmatpush1.msra.mxu0 %v219
    %581 = vmatprep.subr.mxu0 0.0
    %582 = vmatpush1.msra.mxu0 %v222
    %583 = vmatprep.subr.mxu0 0.0
    %584 = vmatpush1.msra.mxu0 %v225
    %585 = vmatprep.subr.mxu0 0.0
    %586 = vmatpush1.msra.mxu0 %v228
    %587 = vmatprep.subr.mxu0 0.0
    %588 = vmatpush1.msra.mxu0 %v231
    %589 = vmatprep.subr.mxu0 0.0
    %590 = vmatpush1.msra.mxu0 %v234
    %591 = vmatprep.subr.mxu0 0.0
    %592 = vmatpush1.msra.mxu0 %v237
    %593 = vmatprep.subr.mxu0 0.0
    %594 = vmatpush1.msra.mxu0 %v240
    %595 = vmatprep.subr.mxu0 0.0
    %596 = vmatpush1.msra.mxu0 %v243
    %597 = vmatprep.subr.mxu0 0.0
    %598 = vmatpush1.msra.mxu0 %v246
    %599 = vmatprep.subr.mxu0 0.0
    %600 = vmatpush1.msra.mxu0 %v249
    %601 = vmatprep.subr.mxu0 0.0
    %602 = vmatpush1.msra.mxu0 %v252
    %603 = vmatprep.subr.mxu0 0.0
    %604 = vmatpush1.msra.mxu0 %v255
    %605 = vmatprep.subr.mxu0 0.0
    %606 = vmatpush1.msra.mxu0 %v258
    %607 = vmatprep.subr.mxu0 0.0
    %608 = vmatpush1.msra.mxu0 0.0
    %609 = vmatprep.subr.mxu0 0.0
    %610 = vmatpush1.msra.mxu0 0.0
    %611 = vmatprep.subr.mxu0 0.0
    %612 = vmatpush1.msra.mxu0 0.0
    %613 = vmatprep.subr.mxu0 0.0
    %614 = vmatpush1.msra.mxu0 0.0
    %615 = vmatprep.subr.mxu0 0.0
    %616 = vmatpush1.msra.mxu0 0.0
    %617 = vmatprep.subr.mxu0 0.0
    %618 = vmatpush1.msra.mxu0 0.0
    %619 = vmatprep.subr.mxu0 0.0
    %620 = vmatpush1.msra.mxu0 0.0
    %621 = vmatprep.subr.mxu0 0.0
    %622 = vmatpush1.msra.mxu0 0.0
    %623 = vmatprep.subr.mxu0 0.0
    %624 = vmatpush1.msra.mxu0 0.0
    %625 = vmatprep.subr.mxu0 0.0
    %626 = vmatpush1.msra.mxu0 0.0
    %627 = vmatprep.subr.mxu0 0.0
    %628 = vmatpush1.msra.mxu0 0.0
    %629 = vmatprep.subr.mxu0 0.0
    %630 = vmatpush1.msra.mxu0 0.0
    %631 = vmatprep.subr.mxu0 0.0
    %632 = vmatpush1.msra.mxu0 0.0
    %633 = vmatprep.subr.mxu0 0.0
    %634 = vmatpush1.msra.mxu0 0.0
    %635 = vmatprep.subr.mxu0 0.0
    %636 = vmatpush1.msra.mxu0 0.0
    %637 = vmatprep.subr.mxu0 0.0
    %638 = vmatpush1.msra.mxu0 0.0
    %639 = vmatprep.mubr.f32.mxu0 0.0
    %640 = vmatmul.mubr.f32.gmra.mrb[0].mxu0 %v502
    %v641 = vpop.f32.mrb[0].mxu0
    %v642 = vadd.f32 %v498, %v641
    %v643 = vpop.f32.mrb[0].mxu0
    %644 = vdwg.mxu0
    %v647 = vsel %vm357, %v210, %v200
    %649 = vmatprep.subr.mxu0 %v308
    %650 = vmatpush1.msra.mxu0 %v307
    %651 = vmatprep.subr.mxu0 %v311
    %652 = vmatpush1.msra.mxu0 %v310
    %653 = vmatprep.subr.mxu0 %v314
    %654 = vmatpush1.msra.mxu0 %v313
    %655 = vmatprep.subr.mxu0 %v317
    %656 = vmatpush1.msra.mxu0 %v316
    %657 = vmatprep.subr.mxu0 %v320
    %658 = vmatpush1.msra.mxu0 %v319
    %659 = vmatprep.subr.mxu0 %v323
    %660 = vmatpush1.msra.mxu0 %v322
    %661 = vmatprep.subr.mxu0 %v326
    %662 = vmatpush1.msra.mxu0 %v325
    %663 = vmatprep.subr.mxu0 %v329
    %664 = vmatpush1.msra.mxu0 %v328
    %665 = vmatprep.subr.mxu0 %v332
    %666 = vmatpush1.msra.mxu0 %v331
    %667 = vmatprep.subr.mxu0 %v335
    %668 = vmatpush1.msra.mxu0 %v334
    %669 = vmatprep.subr.mxu0 %v338
    %670 = vmatpush1.msra.mxu0 %v337
    %671 = vmatprep.subr.mxu0 %v341
    %672 = vmatpush1.msra.mxu0 %v340
    %673 = vmatprep.subr.mxu0 %v344
    %674 = vmatpush1.msra.mxu0 %v343
    %675 = vmatprep.subr.mxu0 %v347
    %676 = vmatpush1.msra.mxu0 %v346
    %677 = vmatprep.subr.mxu0 %v350
    %678 = vmatpush1.msra.mxu0 %v349
    %679 = vmatprep.subr.mxu0 %v353
    %680 = vmatpush1.msra.mxu0 %v352
    %681 = vmatprep.subr.mxu0 0.0
    %682 = vmatpush1.msra.mxu0 0.0
    %683 = vmatprep.subr.mxu0 0.0
    %684 = vmatpush1.msra.mxu0 0.0
    %685 = vmatprep.subr.mxu0 0.0
    %686 = vmatpush1.msra.mxu0 0.0
    %687 = vmatprep.subr.mxu0 0.0
    %688 = vmatpush1.msra.mxu0 0.0
    %689 = vmatprep.subr.mxu0 0.0
    %690 = vmatpush1.msra.mxu0 0.0
    %691 = vmatprep.subr.mxu0 0.0
    %692 = vmatpush1.msra.mxu0 0.0
    %693 = vmatprep.subr.mxu0 0.0
    %694 = vmatpush1.msra.mxu0 0.0
    %695 = vmatprep.subr.mxu0 0.0
    %696 = vmatpush1.msra.mxu0 0.0
    %697 = vmatprep.subr.mxu0 0.0
    %698 = vmatpush1.msra.mxu0 0.0
    %699 = vmatprep.subr.mxu0 0.0
    %700 = vmatpush1.msra.mxu0 0.0
    %701 = vmatprep.subr.mxu0 0.0
    %702 = vmatpush1.msra.mxu0 0.0
    %703 = vmatprep.subr.mxu0 0.0
    %704 = vmatpush1.msra.mxu0 0.0
    %705 = vmatprep.subr.mxu0 0.0
    %706 = vmatpush1.msra.mxu0 0.0
    %707 = vmatprep.subr.mxu0 0.0
    %708 = vmatpush1.msra.mxu0 0.0
    %709 = vmatprep.subr.mxu0 0.0
    %710 = vmatpush1.msra.mxu0 0.0
    %711 = vmatprep.subr.mxu0 0.0
    %712 = vmatpush1.msra.mxu0 0.0
    %713 = vmatprep.mubr.f32.mxu0 0.0
    %714 = vmatmul.mubr.f32.gmra.mrb[0].mxu0 %v647
    %v715 = vpop.f32.mrb[0].mxu0
    %v716 = vadd.f32 0.0, %v715
    %v717 = vpop.f32.mrb[0].mxu0
    %v718 = vadd.f32 0.0, %v717
    %719 = vdwg.mxu0
    %720 = vmatprep.subr.mxu0 0.0
    %721 = vmatpush1.msra.mxu0 %v309
    %722 = vmatprep.subr.mxu0 0.0
    %723 = vmatpush1.msra.mxu0 %v312
    %724 = vmatprep.subr.mxu0 0.0
    %725 = vmatpush1.msra.mxu0 %v315
    %726 = vmatprep.subr.mxu0 0.0
    %727 = vmatpush1.msra.mxu0 %v318
    %728 = vmatprep.subr.mxu0 0.0
    %729 = vmatpush1.msra.mxu0 %v321
    %730 = vmatprep.subr.mxu0 0.0
    %731 = vmatpush1.msra.mxu0 %v324
    %732 = vmatprep.subr.mxu0 0.0
    %733 = vmatpush1.msra.mxu0 %v327
    %734 = vmatprep.subr.mxu0 0.0
    %735 = vmatpush1.msra.mxu0 %v330
    %736 = vmatprep.subr.mxu0 0.0
    %737 = vmatpush1.msra.mxu0 %v333
    %738 = vmatprep.subr.mxu0 0.0
    %739 = vmatpush1.msra.mxu0 %v336
    %740 = vmatprep.subr.mxu0 0.0
    %741 = vmatpush1.msra.mxu0 %v339
    %742 = vmatprep.subr.mxu0 0.0
    %743 = vmatpush1.msra.mxu0 %v342
    %744 = vmatprep.subr.mxu0 0.0
    %745 = vmatpush1.msra.mxu0 %v345
    %746 = vmatprep.subr.mxu0 0.0
    %747 = vmatpush1.msra.mxu0 %v348
    %748 = vmatprep.subr.mxu0 0.0
    %749 = vmatpush1.msra.mxu0 %v351
    %750 = vmatprep.subr.mxu0 0.0
    %751 = vmatpush1.msra.mxu0 %v354
    %752 = vmatprep.subr.mxu0 0.0
    %753 = vmatpush1.msra.mxu0 0.0
    %754 = vmatprep.subr.mxu0 0.0
    %755 = vmatpush1.msra.mxu0 0.0
    %756 = vmatprep.subr.mxu0 0.0
    %757 = vmatpush1.msra.mxu0 0.0
    %758 = vmatprep.subr.mxu0 0.0
    %759 = vmatpush1.msra.mxu0 0.0
    %760 = vmatprep.subr.mxu0 0.0
    %761 = vmatpush1.msra.mxu0 0.0
    %762 = vmatprep.subr.mxu0 0.0
    %763 = vmatpush1.msra.mxu0 0.0
    %764 = vmatprep.subr.mxu0 0.0
    %765 = vmatpush1.msra.mxu0 0.0
    %766 = vmatprep.subr.mxu0 0.0
    %767 = vmatpush1.msra.mxu0 0.0
    %768 = vmatprep.subr.mxu0 0.0
    %769 = vmatpush1.msra.mxu0 0.0
    %770 = vmatprep.subr.mxu0 0.0
    %771 = vmatpush1.msra.mxu0 0.0
    %772 = vmatprep.subr.mxu0 0.0
    %773 = vmatpush1.msra.mxu0 0.0
    %774 = vmatprep.subr.mxu0 0.0
    %775 = vmatpush1.msra.mxu0 0.0
    %776 = vmatprep.subr.mxu0 0.0
    %777 = vmatpush1.msra.mxu0 0.0
    %778 = vmatprep.subr.mxu0 0.0
    %779 = vmatpush1.msra.mxu0 0.0
    %780 = vmatprep.subr.mxu0 0.0
    %781 = vmatpush1.msra.mxu0 0.0
    %782 = vmatprep.subr.mxu0 0.0
    %783 = vmatpush1.msra.mxu0 0.0
    %784 = vmatprep.mubr.f32.mxu0 0.0
    %785 = vmatmul.mubr.f32.gmra.mrb[0].mxu0 %v647
    %v786 = vpop.f32.mrb[0].mxu0
    %v787 = vadd.f32 0.0, %v786
    %v788 = vpop.f32.mrb[0].mxu0
    %789 = vdwg.mxu0
    %v790 = vadd.f32 %v571, %v716
    %v791 = vadd.f32 %v573, %v718
    %v792 = vadd.f32 %v642, %v787
    %v793 = vld [vmem:[%s4] sm:$0x7]
    %v795 = vlaneseq
    %v796 = vshrl.u32 %v795, 7
    %v797 = vsub.s32 0, %v796
    %v798 = vrot.slane %v793, %v797
    %v799 = vlaneseq
    %v800 = vshrl.u32 %v799, 7
    %v801 = vsub.s32 1, %v800
    %v802 = vrot.slane %v793, %v801
    %v803 = vlaneseq
    %v804 = vshrl.u32 %v803, 7
    %v805 = vsub.s32 2, %v804
    %v806 = vrot.slane %v793, %v805
    %v810 = vadd.f32 %v790, %v798
    %v811 = vadd.f32 %v791, %v802
    %v812 = vadd.f32 %v792, %v806
    %v813 = vmul.f32 %v810, 0.5
    %v814 = vmul.f32 %v813, 1.442695
    %v815 = vpow.pop %v814
    %v816 = vld [vmem:[%s1] sm:$0x3]
    %818 = vrot.lane.b32.xlu0 %v816, 64
    %v819 = vpop.permute.xlu0 %818
    %v821 = vmul.f32 %v815, %v819
    %823 = vrot.lane.b32.xlu0 %v821, 64
    %v824 = vpop.permute.xlu0 %823
    %v826 = vadd.f32 %v810, %v824
    %v827 = vld [vmem:[%s2] sm:$0x3]
    %v828 = vmul.f32 %v812, %v827
    %v829 = vld [vmem:[#allocation7] sm:$0xff]
    %v830 = vld [vmem:[#allocation7 + $0x8] sm:$0xff]
    %v831 = vld [vmem:[#allocation7 + $0x10] sm:$0xff]
    %v832 = vld [vmem:[#allocation7 + $0x18] sm:$0xff]
    %v833 = vld [vmem:[#allocation7 + $0x20] sm:$0xff]
    %v834 = vld [vmem:[#allocation7 + $0x28] sm:$0xff]
    %v835 = vld [vmem:[#allocation7 + $0x30] sm:$0xff]
    %v836 = vld [vmem:[#allocation7 + $0x38] sm:$0xff]
    %v837 = vld [vmem:[#allocation7 + $0x40] sm:$0xff]
    %v838 = vld [vmem:[#allocation7 + $0x48] sm:$0xff]
    %v839 = vld [vmem:[#allocation7 + $0x50] sm:$0xff]
    %v840 = vld [vmem:[#allocation7 + $0x58] sm:$0xff]
    %v841 = vld [vmem:[#allocation7 + $0x60] sm:$0xff]
    %v842 = vld [vmem:[#allocation7 + $0x68] sm:$0xff]
    %v843 = vld [vmem:[#allocation7 + $0x70] sm:$0xff]
    %v844 = vld [vmem:[#allocation7 + $0x78] sm:$0xff]
    %v845 = vld [vmem:[#allocation7 + $0x80] sm:$0xff]
    %v846 = vld [vmem:[#allocation7 + $0x88] sm:$0xff]
    %v847 = vld [vmem:[#allocation7 + $0x90] sm:$0xff]
    %v848 = vld [vmem:[#allocation7 + $0x98] sm:$0xff]
    %v849 = vld [vmem:[#allocation7 + $0xa0] sm:$0xff]
    %v850 = vld [vmem:[#allocation7 + $0xa8] sm:$0xff]
    %v851 = vld [vmem:[#allocation7 + $0xb0] sm:$0xff]
    %v852 = vld [vmem:[#allocation7 + $0xb8] sm:$0xff]
    %v853 = vld [vmem:[#allocation7 + $0xc0] sm:$0xff]
    %v854 = vld [vmem:[#allocation7 + $0xc8] sm:$0xff]
    %v855 = vld [vmem:[#allocation7 + $0xd0] sm:$0xff]
    %v856 = vld [vmem:[#allocation7 + $0xd8] sm:$0xff]
    %v857 = vld [vmem:[#allocation7 + $0xe0] sm:$0xff]
    %v858 = vld [vmem:[#allocation7 + $0xe8] sm:$0xff]
    %v859 = vld [vmem:[#allocation7 + $0xf0] sm:$0xff]
    %v860 = vld [vmem:[#allocation7 + $0xf8] sm:$0xff]
    %v861 = vld [vmem:[#allocation7 + $0x100] sm:$0xff]
    %v862 = vld [vmem:[#allocation7 + $0x108] sm:$0xff]
    %v863 = vld [vmem:[#allocation7 + $0x110] sm:$0xff]
    %v864 = vld [vmem:[#allocation7 + $0x118] sm:$0xff]
    %v865 = vld [vmem:[#allocation7 + $0x120] sm:$0xff]
    %v866 = vld [vmem:[#allocation7 + $0x128] sm:$0xff]
    %v867 = vld [vmem:[#allocation7 + $0x130] sm:$0xff]
    %v868 = vld [vmem:[#allocation7 + $0x138] sm:$0xff]
    %v869 = vld [vmem:[#allocation7 + $0x140] sm:$0xff]
    %v870 = vld [vmem:[#allocation7 + $0x148] sm:$0xff]
    %v871 = vld [vmem:[#allocation7 + $0x150] sm:$0xff]
    %v872 = vld [vmem:[#allocation7 + $0x158] sm:$0xff]
    %v873 = vld [vmem:[#allocation7 + $0x160] sm:$0xff]
    %v874 = vld [vmem:[#allocation7 + $0x168] sm:$0xff]
    %v875 = vld [vmem:[#allocation7 + $0x170] sm:$0xff]
    %v876 = vld [vmem:[#allocation7 + $0x178] sm:$0xff]
    %v877 = vld [vmem:[#allocation7 + $0x180] sm:$0xff]
    %v878 = vld [vmem:[#allocation7 + $0x188] sm:$0xff]
    %v879 = vld [vmem:[#allocation7 + $0x190] sm:$0xff]
    %v880 = vld [vmem:[#allocation7 + $0x198] sm:$0xff]
    %v881 = vld [vmem:[#allocation7 + $0x1a0] sm:$0xff]
    %v882 = vld [vmem:[#allocation7 + $0x1a8] sm:$0xff]
    %v883 = vld [vmem:[#allocation7 + $0x1b0] sm:$0xff]
    %v884 = vld [vmem:[#allocation7 + $0x1b8] sm:$0xff]
    %v885 = vld [vmem:[#allocation7 + $0x1c0] sm:$0xff]
    %v886 = vld [vmem:[#allocation7 + $0x1c8] sm:$0xff]
    %v887 = vld [vmem:[#allocation7 + $0x1d0] sm:$0xff]
    %v888 = vld [vmem:[#allocation7 + $0x1d8] sm:$0xff]
    %v889 = vld [vmem:[#allocation7 + $0x1e0] sm:$0xff]
    %v890 = vld [vmem:[#allocation7 + $0x1e8] sm:$0xff]
    %v891 = vld [vmem:[#allocation7 + $0x1f0] sm:$0xff]
    %v892 = vld [vmem:[#allocation7 + $0x1f8] sm:$0xff]
    %v893 = vld [vmem:[#allocation7 + $0x200] sm:$0xff]
    %v894 = vld [vmem:[#allocation7 + $0x208] sm:$0xff]
    %v895 = vld [vmem:[#allocation7 + $0x210] sm:$0xff]
    %v896 = vld [vmem:[#allocation7 + $0x218] sm:$0xff]
    %v897 = vld [vmem:[#allocation7 + $0x220] sm:$0xff]
    %v898 = vld [vmem:[#allocation7 + $0x228] sm:$0xff]
    %v899 = vld [vmem:[#allocation7 + $0x230] sm:$0xff]
    %v900 = vld [vmem:[#allocation7 + $0x238] sm:$0xff]
    %v901 = vld [vmem:[#allocation7 + $0x240] sm:$0xff]
    %v902 = vld [vmem:[#allocation7 + $0x248] sm:$0xff]
    %v903 = vld [vmem:[#allocation7 + $0x250] sm:$0xff]
    %v904 = vld [vmem:[#allocation7 + $0x258] sm:$0xff]
    %v905 = vld [vmem:[#allocation7 + $0x260] sm:$0xff]
    %v906 = vld [vmem:[#allocation7 + $0x268] sm:$0xff]
    %v907 = vld [vmem:[#allocation7 + $0x270] sm:$0xff]
    %v908 = vld [vmem:[#allocation7 + $0x278] sm:$0xff]
    %vm909 = vcmask 523264
    %v911 = vsel %vm909, %v811, 0
    %913 = vmatprep.subr.mxu0 %v846
    %914 = vmatpush1.msra.mxu0 %v845
    %915 = vmatprep.subr.mxu0 %v848
    %916 = vmatpush1.msra.mxu0 %v847
    %917 = vmatprep.subr.mxu0 %v850
    %918 = vmatpush1.msra.mxu0 %v849
    %919 = vmatprep.subr.mxu0 %v852
    %920 = vmatpush1.msra.mxu0 %v851
    %921 = vmatprep.subr.mxu0 %v854
    %922 = vmatpush1.msra.mxu0 %v853
    %923 = vmatprep.subr.mxu0 %v856
    %924 = vmatpush1.msra.mxu0 %v855
    %925 = vmatprep.subr.mxu0 %v858
    %926 = vmatpush1.msra.mxu0 %v857
    %927 = vmatprep.subr.mxu0 %v860
    %928 = vmatpush1.msra.mxu0 %v859
    %929 = vmatprep.subr.mxu0 0.0
    %930 = vmatpush1.msra.mxu0 0.0
    %931 = vmatprep.subr.mxu0 0.0
    %932 = vmatpush1.msra.mxu0 0.0
    %933 = vmatprep.subr.mxu0 0.0
    %934 = vmatpush1.msra.mxu0 0.0
    %935 = vmatprep.subr.mxu0 0.0
    %936 = vmatpush1.msra.mxu0 0.0
    %937 = vmatprep.subr.mxu0 0.0
    %938 = vmatpush1.msra.mxu0 0.0
    %939 = vmatprep.subr.mxu0 0.0
    %940 = vmatpush1.msra.mxu0 0.0
    %941 = vmatprep.subr.mxu0 0.0
    %942 = vmatpush1.msra.mxu0 0.0
    %943 = vmatprep.subr.mxu0 0.0
    %944 = vmatpush1.msra.mxu0 0.0
    %945 = vmatprep.subr.mxu0 0.0
    %946 = vmatpush1.msra.mxu0 0.0
    %947 = vmatprep.subr.mxu0 0.0
    %948 = vmatpush1.msra.mxu0 0.0
    %949 = vmatprep.subr.mxu0 0.0
    %950 = vmatpush1.msra.mxu0 0.0
    %951 = vmatprep.subr.mxu0 0.0
    %952 = vmatpush1.msra.mxu0 0.0
    %953 = vmatprep.subr.mxu0 0.0
    %954 = vmatpush1.msra.mxu0 0.0
    %955 = vmatprep.subr.mxu0 0.0
    %956 = vmatpush1.msra.mxu0 0.0
    %957 = vmatprep.subr.mxu0 0.0
    %958 = vmatpush1.msra.mxu0 0.0
    %959 = vmatprep.subr.mxu0 0.0
    %960 = vmatpush1.msra.mxu0 0.0
    %961 = vmatprep.subr.mxu0 0.0
    %962 = vmatpush1.msra.mxu0 0.0
    %963 = vmatprep.subr.mxu0 0.0
    %964 = vmatpush1.msra.mxu0 0.0
    %965 = vmatprep.subr.mxu0 0.0
    %966 = vmatpush1.msra.mxu0 0.0
    %967 = vmatprep.subr.mxu0 0.0
    %968 = vmatpush1.msra.mxu0 0.0
    %969 = vmatprep.subr.mxu0 0.0
    %970 = vmatpush1.msra.mxu0 0.0
    %971 = vmatprep.subr.mxu0 0.0
    %972 = vmatpush1.msra.mxu0 0.0
    %973 = vmatprep.subr.mxu0 0.0
    %974 = vmatpush1.msra.mxu0 0.0
    %975 = vmatprep.subr.mxu0 0.0
    %976 = vmatpush1.msra.mxu0 0.0
    %977 = vmatprep.mubr.f32.mxu0 0.0
    %978 = vmatmul.mubr.f32.gmra.mrb[0].mxu0 %v911
    %v979 = vpop.f32.mrb[0].mxu0
    %v980 = vadd.f32 0.0, %v979
    %v981 = vpop.f32.mrb[0].mxu0
    %v982 = vadd.f32 0.0, %v981
    %983 = vdwg.mxu0
    %v985 = vsel %vm909, %v826, 0
    %987 = vmatprep.subr.mxu0 %v830
    %988 = vmatpush1.msra.mxu0 %v829
    %989 = vmatprep.subr.mxu0 %v832
    %990 = vmatpush1.msra.mxu0 %v831
    %991 = vmatprep.subr.mxu0 %v834
    %992 = vmatpush1.msra.mxu0 %v833
    %993 = vmatprep.subr.mxu0 %v836
    %994 = vmatpush1.msra.mxu0 %v835
    %995 = vmatprep.subr.mxu0 %v838
    %996 = vmatpush1.msra.mxu0 %v837
    %997 = vmatprep.subr.mxu0 %v840
    %998 = vmatpush1.msra.mxu0 %v839
    %999 = vmatprep.subr.mxu0 %v842
    %1000 = vmatpush1.msra.mxu0 %v841
    %1001 = vmatprep.subr.mxu0 %v844
    %1002 = vmatpush1.msra.mxu0 %v843
    %1003 = vmatprep.subr.mxu0 0.0
    %1004 = vmatpush1.msra.mxu0 0.0
    %1005 = vmatprep.subr.mxu0 0.0
    %1006 = vmatpush1.msra.mxu0 0.0
    %1007 = vmatprep.subr.mxu0 0.0
    %1008 = vmatpush1.msra.mxu0 0.0
    %1009 = vmatprep.subr.mxu0 0.0
    %1010 = vmatpush1.msra.mxu0 0.0
    %1011 = vmatprep.subr.mxu0 0.0
    %1012 = vmatpush1.msra.mxu0 0.0
    %1013 = vmatprep.subr.mxu0 0.0
    %1014 = vmatpush1.msra.mxu0 0.0
    %1015 = vmatprep.subr.mxu0 0.0
    %1016 = vmatpush1.msra.mxu0 0.0
    %1017 = vmatprep.subr.mxu0 0.0
    %1018 = vmatpush1.msra.mxu0 0.0
    %1019 = vmatprep.subr.mxu0 0.0
    %1020 = vmatpush1.msra.mxu0 0.0
    %1021 = vmatprep.subr.mxu0 0.0
    %1022 = vmatpush1.msra.mxu0 0.0
    %1023 = vmatprep.subr.mxu0 0.0
    %1024 = vmatpush1.msra.mxu0 0.0
    %1025 = vmatprep.subr.mxu0 0.0
    %1026 = vmatpush1.msra.mxu0 0.0
    %1027 = vmatprep.subr.mxu0 0.0
    %1028 = vmatpush1.msra.mxu0 0.0
    %1029 = vmatprep.subr.mxu0 0.0
    %1030 = vmatpush1.msra.mxu0 0.0
    %1031 = vmatprep.subr.mxu0 0.0
    %1032 = vmatpush1.msra.mxu0 0.0
    %1033 = vmatprep.subr.mxu0 0.0
    %1034 = vmatpush1.msra.mxu0 0.0
    %1035 = vmatprep.subr.mxu0 0.0
    %1036 = vmatpush1.msra.mxu0 0.0
    %1037 = vmatprep.subr.mxu0 0.0
    %1038 = vmatpush1.msra.mxu0 0.0
    %1039 = vmatprep.subr.mxu0 0.0
    %1040 = vmatpush1.msra.mxu0 0.0
    %1041 = vmatprep.subr.mxu0 0.0
    %1042 = vmatpush1.msra.mxu0 0.0
    %1043 = vmatprep.subr.mxu0 0.0
    %1044 = vmatpush1.msra.mxu0 0.0
    %1045 = vmatprep.subr.mxu0 0.0
    %1046 = vmatpush1.msra.mxu0 0.0
    %1047 = vmatprep.subr.mxu0 0.0
    %1048 = vmatpush1.msra.mxu0 0.0
    %1049 = vmatprep.subr.mxu0 0.0
    %1050 = vmatpush1.msra.mxu0 0.0
    %1051 = vmatprep.mubr.f32.mxu0 0.0
    %1052 = vmatmul.mubr.f32.gmra.mrb[0].mxu0 %v985
    %v1053 = vpop.f32.mrb[0].mxu0
    %v1054 = vadd.f32 %v980, %v1053
    %v1055 = vpop.f32.mrb[0].mxu0
    %v1056 = vadd.f32 %v982, %v1055
    %1057 = vdwg.mxu0
    %1058 = vrot.lane.b32.xlu0 %v811, 64
    %v1059 = vpop.permute.xlu0 %1058
    %v1060 = vsel %vm909, %v1059, 0
    %1062 = vmatprep.subr.mxu0 %v862
    %1063 = vmatpush1.msra.mxu0 %v861
    %1064 = vmatprep.subr.mxu0 %v864
    %1065 = vmatpush1.msra.mxu0 %v863
    %1066 = vmatprep.subr.mxu0 %v866
    %1067 = vmatpush1.msra.mxu0 %v865
    %1068 = vmatprep.subr.mxu0 %v868
    %1069 = vmatpush1.msra.mxu0 %v867
    %1070 = vmatprep.subr.mxu0 %v870
    %1071 = vmatpush1.msra.mxu0 %v869
    %1072 = vmatprep.subr.mxu0 %v872
    %1073 = vmatpush1.msra.mxu0 %v871
    %1074 = vmatprep.subr.mxu0 %v874
    %1075 = vmatpush1.msra.mxu0 %v873
    %1076 = vmatprep.subr.mxu0 %v876
    %1077 = vmatpush1.msra.mxu0 %v875
    %1078 = vmatprep.subr.mxu0 0.0
    %1079 = vmatpush1.msra.mxu0 0.0
    %1080 = vmatprep.subr.mxu0 0.0
    %1081 = vmatpush1.msra.mxu0 0.0
    %1082 = vmatprep.subr.mxu0 0.0
    %1083 = vmatpush1.msra.mxu0 0.0
    %1084 = vmatprep.subr.mxu0 0.0
    %1085 = vmatpush1.msra.mxu0 0.0
    %1086 = vmatprep.subr.mxu0 0.0
    %1087 = vmatpush1.msra.mxu0 0.0
    %1088 = vmatprep.subr.mxu0 0.0
    %1089 = vmatpush1.msra.mxu0 0.0
    %1090 = vmatprep.subr.mxu0 0.0
    %1091 = vmatpush1.msra.mxu0 0.0
    %1092 = vmatprep.subr.mxu0 0.0
    %1093 = vmatpush1.msra.mxu0 0.0
    %1094 = vmatprep.subr.mxu0 0.0
    %1095 = vmatpush1.msra.mxu0 0.0
    %1096 = vmatprep.subr.mxu0 0.0
    %1097 = vmatpush1.msra.mxu0 0.0
    %1098 = vmatprep.subr.mxu0 0.0
    %1099 = vmatpush1.msra.mxu0 0.0
    %1100 = vmatprep.subr.mxu0 0.0
    %1101 = vmatpush1.msra.mxu0 0.0
    %1102 = vmatprep.subr.mxu0 0.0
    %1103 = vmatpush1.msra.mxu0 0.0
    %1104 = vmatprep.subr.mxu0 0.0
    %1105 = vmatpush1.msra.mxu0 0.0
    %1106 = vmatprep.subr.mxu0 0.0
    %1107 = vmatpush1.msra.mxu0 0.0
    %1108 = vmatprep.subr.mxu0 0.0
    %1109 = vmatpush1.msra.mxu0 0.0
    %1110 = vmatprep.subr.mxu0 0.0
    %1111 = vmatpush1.msra.mxu0 0.0
    %1112 = vmatprep.subr.mxu0 0.0
    %1113 = vmatpush1.msra.mxu0 0.0
    %1114 = vmatprep.subr.mxu0 0.0
    %1115 = vmatpush1.msra.mxu0 0.0
    %1116 = vmatprep.subr.mxu0 0.0
    %1117 = vmatpush1.msra.mxu0 0.0
    %1118 = vmatprep.subr.mxu0 0.0
    %1119 = vmatpush1.msra.mxu0 0.0
    %1120 = vmatprep.subr.mxu0 0.0
    %1121 = vmatpush1.msra.mxu0 0.0
    %1122 = vmatprep.subr.mxu0 0.0
    %1123 = vmatpush1.msra.mxu0 0.0
    %1124 = vmatprep.subr.mxu0 0.0
    %1125 = vmatpush1.msra.mxu0 0.0
    %1126 = vmatprep.mubr.f32.mxu0 0.0
    %1127 = vmatmul.mubr.f32.gmra.mrb[0].mxu0 %v1060
    %v1128 = vpop.f32.mrb[0].mxu0
    %v1129 = vadd.f32 0.0, %v1128
    %v1130 = vpop.f32.mrb[0].mxu0
    %v1131 = vadd.f32 0.0, %v1130
    %1132 = vdwg.mxu0
    %v1133 = vadd.f32 %v1054, %v1129
    %v1134 = vadd.f32 %v1056, %v1131
    %1135 = vmatprep.subr.mxu0 %v878
    %1136 = vmatpush1.msra.mxu0 %v877
    %1137 = vmatprep.subr.mxu0 %v880
    %1138 = vmatpush1.msra.mxu0 %v879
    %1139 = vmatprep.subr.mxu0 %v882
    %1140 = vmatpush1.msra.mxu0 %v881
    %1141 = vmatprep.subr.mxu0 %v884
    %1142 = vmatpush1.msra.mxu0 %v883
    %1143 = vmatprep.subr.mxu0 %v886
    %1144 = vmatpush1.msra.mxu0 %v885
    %1145 = vmatprep.subr.mxu0 %v888
    %1146 = vmatpush1.msra.mxu0 %v887
    %1147 = vmatprep.subr.mxu0 %v890
    %1148 = vmatpush1.msra.mxu0 %v889
    %1149 = vmatprep.subr.mxu0 %v892
    %1150 = vmatpush1.msra.mxu0 %v891
    %1151 = vmatprep.subr.mxu0 %v894
    %1152 = vmatpush1.msra.mxu0 %v893
    %1153 = vmatprep.subr.mxu0 %v896
    %1154 = vmatpush1.msra.mxu0 %v895
    %1155 = vmatprep.subr.mxu0 %v898
    %1156 = vmatpush1.msra.mxu0 %v897
    %1157 = vmatprep.subr.mxu0 %v900
    %1158 = vmatpush1.msra.mxu0 %v899
    %1159 = vmatprep.subr.mxu0 %v902
    %1160 = vmatpush1.msra.mxu0 %v901
    %1161 = vmatprep.subr.mxu0 %v904
    %1162 = vmatpush1.msra.mxu0 %v903
    %1163 = vmatprep.subr.mxu0 %v906
    %1164 = vmatpush1.msra.mxu0 %v905
    %1165 = vmatprep.subr.mxu0 %v908
    %1166 = vmatpush1.msra.mxu0 %v907
    %1167 = vmatprep.subr.mxu0 0.0
    %1168 = vmatpush1.msra.mxu0 0.0
    %1169 = vmatprep.subr.mxu0 0.0
    %1170 = vmatpush1.msra.mxu0 0.0
    %1171 = vmatprep.subr.mxu0 0.0
    %1172 = vmatpush1.msra.mxu0 0.0
    %1173 = vmatprep.subr.mxu0 0.0
    %1174 = vmatpush1.msra.mxu0 0.0
    %1175 = vmatprep.subr.mxu0 0.0
    %1176 = vmatpush1.msra.mxu0 0.0
    %1177 = vmatprep.subr.mxu0 0.0
    %1178 = vmatpush1.msra.mxu0 0.0
    %1179 = vmatprep.subr.mxu0 0.0
    %1180 = vmatpush1.msra.mxu0 0.0
    %1181 = vmatprep.subr.mxu0 0.0
    %1182 = vmatpush1.msra.mxu0 0.0
    %1183 = vmatprep.subr.mxu0 0.0
    %1184 = vmatpush1.msra.mxu0 0.0
    %1185 = vmatprep.subr.mxu0 0.0
    %1186 = vmatpush1.msra.mxu0 0.0
    %1187 = vmatprep.subr.mxu0 0.0
    %1188 = vmatpush1.msra.mxu0 0.0
    %1189 = vmatprep.subr.mxu0 0.0
    %1190 = vmatpush1.msra.mxu0 0.0
    %1191 = vmatprep.subr.mxu0 0.0
    %1192 = vmatpush1.msra.mxu0 0.0
    %1193 = vmatprep.subr.mxu0 0.0
    %1194 = vmatpush1.msra.mxu0 0.0
    %1195 = vmatprep.subr.mxu0 0.0
    %1196 = vmatpush1.msra.mxu0 0.0
    %1197 = vmatprep.subr.mxu0 0.0
    %1198 = vmatpush1.msra.mxu0 0.0
    %1199 = vmatprep.mubr.f32.mxu0 0.0
    %1200 = vmatmul.mubr.f32.gmra.mrb[0].mxu0 %v828
    %v1201 = vpop.f32.mrb[0].mxu0
    %v1202 = vadd.f32 0.0, %v1201
    %v1203 = vpop.f32.mrb[0].mxu0
    %v1204 = vadd.f32 0.0, %v1203
    %1205 = vdwg.mxu0
    %v1206 = vadd.f32 %v1133, %v1202
    %v1207 = vadd.f32 %v1134, %v1204
    %v1208 = vld [vmem:[%s6] sm:$0x3]
    %v1210 = vlaneseq
    %v1211 = vshrl.u32 %v1210, 7
    %v1212 = vsub.s32 0, %v1211
    %v1213 = vrot.slane %v1208, %v1212
    %v1214 = vlaneseq
    %v1215 = vshrl.u32 %v1214, 7
    %v1216 = vsub.s32 1, %v1215
    %v1217 = vrot.slane %v1208, %v1216
    %v1220 = vadd.f32 %v1206, %v1213
    %v1221 = vadd.f32 %v1207, %v1217
    %1222 = vst [vmem:[#allocation8] sm:$0x3] %v810
    %1223 = vst [vmem:[#allocation8 + $0x2] sm:$0x3] %v1220
    %v1224 = vxor.u32 %v1221, 2147483648
    %v1225 = vmul.f32 %v1224, 1.442695
    %v1226 = vpow.pop %v1225
    %v1227 = vadd.f32 %v1226, 1.0
    %v1228 = vrcp.pop %v1227
    %v1229 = vmul.f32 1.0, %v1228
    %1230 = vst [vmem:[#allocation8 + $0x4] sm:$0x3] %v1229
    // Predicated region
    $region42: #{tpu_custom_call.1} parent=1 // pred_check
      _
    $region43: #{tpu_custom_call.1} parent=1 // pred_check_branch
      %1232 = sbr.rel (0) target = $region45
    $region44: #{tpu_custom_call.1} parent=1 // pred_region
      %s1234 = ssub.s32 96, 96
      %1235 = vsyncadd [#allocation4], %s1234
      %s1237 = sshll.u32 [#allocation8], 4
      %s1238 = int_to_ptr.vmem [resolvable:$true] %s1237
      %1240 = dma.vmem_to_hbm [thread:$0]  %s1238, 96, %s7, [#allocation4]
    $region45: #{tpu_custom_call.1} parent=1 // pred_fallthru
      _
    // Predicated region
    $region46: #{tpu_custom_call.1} parent=1 // pred_check
      _
    $region47: #{tpu_custom_call.1} parent=1 // pred_check_branch
      %1242 = sbr.rel (0) target = $region49
    $region48: #{tpu_custom_call.1} parent=1 // pred_region
      %1243 = dma.done [#allocation4], 96
    $region49: #{tpu_custom_call.1} parent=1 // pred_fallthru
      _
    %1244 = vsyncpa [#allocation3], 1
    %1245 = vsyncpa [#allocation6], 1
    %1246 = vsyncpa [#allocation4], 1

</llo_original>
